<compile_context>
chip_gen: v5e
topology: v5e:2x2
jax: 0.10.0
libtpu: 0.0.40
codegen_flags: <defaults>
</compile_context>

<pallas_src>
import numpy as np
import jax
import jax.numpy as jnp
from jax import lax
from jax.experimental import pallas as pl
from jax.experimental.pallas import tpu as pltpu

# ----------------------------- config --------------------------------------
VOCAB = 100
MAX_POS = 64
HIDDEN = 768
HEADS = 12
HEAD_DIM = HIDDEN // HEADS
FFN = 3072
NUM_CLASSES = 2
LANE = 128            # lane width: narrow head layers zero-padded to this
SUBLANE_BF16 = 16     # bf16 packs 2 rows per sublane -> keep row tiles %16
LN_EPS = 1e-12


def _round_up(n, m):
    return ((n + m - 1) // m) * m


# ----------------------- Pallas fused tail kernel ---------------------------
def _fused_tail_kernel(ffn_ref, res_ref, wf2_ref, bf2_ref, g_ref, bln_ref,
                       w1_ref, b1_ref, w2_ref, b2_ref, w3_ref, b3_ref,
                       o_ref, acc_ref):
    """Grid = (row_tiles, k_tiles over FFN).  Per row tile:
       acc += ffn_chunk @ wf2_chunk (bf16 MXU, f32 acc); on the last k step:
       +bias +residual -> LayerNorm -> 3-layer MLP head -> bf16 output."""
    k = pl.program_id(1)
    nk = pl.num_programs(1)

    @pl.when(k == 0)
    def _():
        acc_ref[...] = jnp.zeros_like(acc_ref)

    # FFN down-projection chunk: (tm, tk) bf16 @ (tk, 768) bf16 -> f32.
    acc_ref[...] += jnp.dot(ffn_ref[...], wf2_ref[...],
                            preferred_element_type=jnp.float32)

    @pl.when(k == nk - 1)
    def _():
        # Residual add + final encoder LayerNorm (f32 statistics).
        x = acc_ref[...] + bf2_ref[...] + res_ref[...].astype(jnp.float32)
        mu = jnp.mean(x, axis=-1, keepdims=True)
        xc = x - mu
        var = jnp.mean(xc * xc, axis=-1, keepdims=True)
        h = (xc * lax.rsqrt(var + LN_EPS)) * g_ref[...] + bln_ref[...]

        # Linear(768,128) + ReLU: bf16 operands, f32 accumulation.
        h1 = jnp.dot(h.astype(jnp.bfloat16), w1_ref[...],
                     preferred_element_type=jnp.float32) + b1_ref[...]
        h1 = jnp.maximum(h1, 0.0)

        # Linear(128,64) zero-padded to (128,128), bf16 MXU.
        h2 = jnp.dot(h1.astype(jnp.bfloat16), w2_ref[...],
                     preferred_element_type=jnp.float32) + b2_ref[...]
        h2 = jnp.maximum(h2, 0.0)

        # Linear(64,2) zero-padded to (128,128): lane-dense (tm,128) bf16 store.
        o_ref[...] = (jnp.dot(h2.astype(jnp.bfloat16), w3_ref[...],
                              preferred_element_type=jnp.float32)
                      + b3_ref[...]).astype(o_ref.dtype)


def fused_tail_forward(ffn_act, resid, hp, *, tile_rows=1024, tile_k=512):
    """ffn_act: (B, S, 3072) bf16 GELU output of the FFN up-projection.
       resid:   (B, S, 768)  bf16 residual stream entering the FFN output add.
       hp: prepared (bf16 / lane-padded) weight dict (see prepare_head_params).
       Returns (B, S, 2) f32 log-probs (LogSoftmax over dim 0, implicit-dim rule)."""
    B, S, _ = ffn_act.shape
    rows = B * S
    assert FFN % tile_k == 0

    a = ffn_act.reshape(rows, FFN)          # flatten in the wrapper (free layout)
    r = resid.reshape(rows, HIDDEN)

    # Row tiling: biggest sublane-aligned tile, but keep >=2 row tiles when
    # rows allow so v7x's two TensorCores both get work.
    tm = min(tile_rows, _round_up(rows, SUBLANE_BF16))
    if rows > SUBLANE_BF16:
        tm = min(tm, max(SUBLANE_BF16, _round_up((rows + 1) // 2, SUBLANE_BF16)))
    rows_p = _round_up(rows, tm)
    if rows_p != rows:
        a = jnp.pad(a, ((0, rows_p - rows), (0, 0)))
        r = jnp.pad(r, ((0, rows_p - rows), (0, 0)))
    grid = (rows_p // tm, FFN // tile_k)

    out = pl.pallas_call(
        _fused_tail_kernel,
        out_shape=jax.ShapeDtypeStruct((rows_p, LANE), jnp.bfloat16),
        grid=grid,
        in_specs=[
            pl.BlockSpec((tm, tile_k), lambda i, k: (i, k)),      # FFN act (bf16)
            pl.BlockSpec((tm, HIDDEN), lambda i, k: (i, 0)),      # residual (bf16)
            pl.BlockSpec((tile_k, HIDDEN), lambda i, k: (k, 0)),  # wf2 chunk (bf16)
            pl.BlockSpec((1, HIDDEN), lambda i, k: (0, 0)),       # bf2
            pl.BlockSpec((1, HIDDEN), lambda i, k: (0, 0)),       # ln gamma
            pl.BlockSpec((1, HIDDEN), lambda i, k: (0, 0)),       # ln beta
            pl.BlockSpec((HIDDEN, LANE), lambda i, k: (0, 0)),    # w1 (bf16)
            pl.BlockSpec((1, LANE), lambda i, k: (0, 0)),         # b1
            pl.BlockSpec((LANE, LANE), lambda i, k: (0, 0)),      # w2 padded (bf16)
            pl.BlockSpec((1, LANE), lambda i, k: (0, 0)),         # b2 padded
            pl.BlockSpec((LANE, LANE), lambda i, k: (0, 0)),      # w3 padded (bf16)
            pl.BlockSpec((1, LANE), lambda i, k: (0, 0)),         # b3 padded
        ],
        out_specs=pl.BlockSpec((tm, LANE), lambda i, k: (i, 0)),
        scratch_shapes=[pltpu.VMEM((tm, HIDDEN), jnp.float32)],   # f32 accumulator
        compiler_params=pltpu.CompilerParams(
            dimension_semantics=("parallel", "arbitrary"),        # rows parallel, K reduce
            vmem_limit_bytes=32 * 1024 * 1024,                    # safe on v5e/v6e/v7x
        ),
    )(a, r, hp["wf2"], hp["bf2"], hp["ln_g"], hp["ln_b"],
      hp["w1"], hp["b1"], hp["w2"], hp["b2"], hp["w3"], hp["b3"])

    logits = out[:rows, :NUM_CLASSES].astype(jnp.float32).reshape(B, S, NUM_CLASSES)
    # nn.LogSoftmax() implicit dim on a 3-D tensor -> dim=0 (batch axis).
    # Tiny (B, S, 2) epilogue in plain XLA keeps the kernel lane-dense/tileable.
    return jax.nn.log_softmax(logits, axis=0)


# ------------------ one-time weight preparation (outside jit) ---------------
def prepare_head_params(bb, w1, b1, w2, b2, w3, b3):
    """bf16 casts, lane-padding of the narrow layers, 2-D biases. Done once."""
    w2p = jnp.zeros((LANE, LANE), jnp.bfloat16)
    w2p = w2p.at[:w2.shape[0], :w2.shape[1]].set(w2.astype(jnp.bfloat16))
    w3p = jnp.zeros((LANE, LANE), jnp.bfloat16)
    w3p = w3p.at[:w3.shape[0], :w3.shape[1]].set(w3.astype(jnp.bfloat16))
    b2p = jnp.zeros((1, LANE), jnp.float32).at[0, :b2.shape[0]].set(b2)
    b3p = jnp.zeros((1, LANE), jnp.float32).at[0, :b3.shape[0]].set(b3)
    return dict(
        wf2=bb["wf2"].astype(jnp.bfloat16),                       # (3072, 768)
        bf2=bb["bf2"].reshape(1, HIDDEN).astype(jnp.float32),
        ln_g=bb["ln2_g"].reshape(1, HIDDEN).astype(jnp.float32),
        ln_b=bb["ln2_b"].reshape(1, HIDDEN).astype(jnp.float32),
        w1=w1.astype(jnp.bfloat16),                               # (768, 128)
        b1=b1.reshape(1, LANE).astype(jnp.float32),
        w2=w2p, b2=b2p, w3=w3p, b3=b3p,
    )


# ------------------ synthetic BERT backbone (plain JAX glue) ----------------
def _layernorm(x, g, b, eps=LN_EPS):
    mu = jnp.mean(x, axis=-1, keepdims=True)
    xc = x - mu
    var = jnp.mean(xc * xc, axis=-1, keepdims=True)
    return (xc * lax.rsqrt(var + eps)) * g + b


def init_backbone(key):
    ks = jax.random.split(key, 10)
    s = 0.02
    n = lambda k, shape: (jax.random.normal(k, shape) * s).astype(jnp.float32)
    return dict(
        word_emb=n(ks[0], (VOCAB, HIDDEN)),
        pos_emb=n(ks[1], (MAX_POS, HIDDEN)),
        ln0_g=jnp.ones((HIDDEN,), jnp.float32), ln0_b=jnp.zeros((HIDDEN,), jnp.float32),
        wq=n(ks[2], (HIDDEN, HIDDEN)), bq=jnp.zeros((HIDDEN,), jnp.float32),
        wk=n(ks[3], (HIDDEN, HIDDEN)), bk=jnp.zeros((HIDDEN,), jnp.float32),
        wv=n(ks[4], (HIDDEN, HIDDEN)), bv=jnp.zeros((HIDDEN,), jnp.float32),
        wo=n(ks[5], (HIDDEN, HIDDEN)), bo=jnp.zeros((HIDDEN,), jnp.float32),
        ln1_g=jnp.ones((HIDDEN,), jnp.float32), ln1_b=jnp.zeros((HIDDEN,), jnp.float32),
        wf1=n(ks[6], (HIDDEN, FFN)), bf1=jnp.zeros((FFN,), jnp.float32),
        wf2=n(ks[7], (FFN, HIDDEN)), bf2=jnp.zeros((HIDDEN,), jnp.float32),
        ln2_g=jnp.ones((HIDDEN,), jnp.float32), ln2_b=jnp.zeros((HIDDEN,), jnp.float32),
    )


def backbone_forward(p, ids, mask):
    """ids: (B, S) int32, mask: (B, S) f32 ->
       (residual h (B,S,768), FFN GELU activations (B,S,3072)).
       FFN down-projection + residual + final LayerNorm are fused into the
       Pallas tail kernel."""
    B, S = ids.shape
    h = p["word_emb"][ids] + p["pos_emb"][:S][None, :, :]
    h = _layernorm(h, p["ln0_g"], p["ln0_b"])

    def split_heads(t):  # (B,S,H) -> (B,heads,S,hd)
        return t.reshape(B, S, HEADS, HEAD_DIM).transpose(0, 2, 1, 3)

    q = split_heads(h @ p["wq"] + p["bq"])
    k = split_heads(h @ p["wk"] + p["bk"])
    v = split_heads(h @ p["wv"] + p["bv"])

    scores = jnp.einsum("bhqd,bhkd->bhqk", q, k) / jnp.sqrt(float(HEAD_DIM))
    scores = scores + (1.0 - mask)[:, None, None, :] * (-1e9)
    attn = jax.nn.softmax(scores, axis=-1)
    ctx = jnp.einsum("bhqk,bhkd->bhqd", attn, v)
    ctx = ctx.transpose(0, 2, 1, 3).reshape(B, S, HIDDEN)

    h = _layernorm(h + ctx @ p["wo"] + p["bo"], p["ln1_g"], p["ln1_b"])
    ffn_act = jax.nn.gelu(h @ p["wf1"] + p["bf1"], approximate=False)
    return h, ffn_act


# -------------------------- head parameters ---------------------------------
def init_linear(key, fan_in, fan_out):
    """Matches torch.nn.Linear default init; stored as (in, out) for x @ W."""
    kw, kb = jax.random.split(key)
    bound = 1.0 / float(np.sqrt(fan_in))
    w = jax.random.uniform(kw, (fan_in, fan_out), jnp.float32, -bound, bound)
    b = jax.random.uniform(kb, (fan_out,), jnp.float32, -bound, bound)
    return w, b


@jax.jit
def custom_bert_forward(params, ids, mask):
    h, ffn_act = backbone_forward(params["backbone"], ids, mask)
    # bf16 activation streaming into the Pallas kernel (halves HBM traffic).
    return fused_tail_forward(ffn_act.astype(jnp.bfloat16),
                              h.astype(jnp.bfloat16),
                              params["head"])


def tail_reference(h, ffn_act, bb, w1, b1, w2, b2, w3, b3):
    """Pure-JAX reference for the fused Pallas tail (identical bf16 cast points)."""
    down = jnp.dot(ffn_act.astype(jnp.bfloat16), bb["wf2"].astype(jnp.bfloat16),
                   preferred_element_type=jnp.float32) + bb["bf2"]
    x = down + h.astype(jnp.bfloat16).astype(jnp.float32)
    x = _layernorm(x, bb["ln2_g"], bb["ln2_b"])
    h1 = jnp.maximum(
        jnp.dot(x.astype(jnp.bfloat16), w1.astype(jnp.bfloat16),
                preferred_element_type=jnp.float32) + b1, 0.0)
    h2 = jnp.maximum(
        jnp.dot(h1.astype(jnp.bfloat16), w2.astype(jnp.bfloat16),
                preferred_element_type=jnp.float32) + b2, 0.0)
    logits = jnp.dot(h2.astype(jnp.bfloat16), w3.astype(jnp.bfloat16),
                     preferred_element_type=jnp.float32) + b3
    return jax.nn.log_softmax(logits, axis=0)


# ------------------------------ main -----------------------------------------
if __name__ == "__main__":
    root = jax.random.PRNGKey(0)
    k_bb, k1, k2, k3, k_ids = jax.random.split(root, 5)

    bb = init_backbone(k_bb)
    w1, b1 = init_linear(k1, 768, 128)
    w2, b2 = init_linear(k2, 128, 64)
    w3, b3 = init_linear(k3, 64, 2)

    # One-time weight prep, hoisted out of the jitted forward (perf review).
    params = dict(backbone=bb, head=prepare_head_params(bb, w1, b1, w2, b2, w3, b3))

    B, S = 2, 8
    ids = jax.random.randint(k_ids, (B, S), 0, VOCAB, dtype=jnp.int32)
    mask = jnp.ones((B, S), jnp.float32)

    out = jax.block_until_ready(custom_bert_forward(params, ids, mask))

    assert out.shape == (B, S, NUM_CLASSES) and out.dtype == jnp.float32
    # log-softmax over dim 0: exp(out) must sum to 1 along axis 0
    assert np.allclose(np.exp(np.asarray(out)).sum(axis=0), 1.0, atol=1e-4)

    # Pallas fused tail vs pure-JAX reference (same bf16 cast points)
    h, ffn_act = backbone_forward(bb, ids, mask)
    ref = tail_reference(h, ffn_act, bb, w1, b1, w2, b2, w3, b3)
    err = float(np.max(np.abs(np.asarray(out) - np.asarray(ref))))
    assert err < 2e-2, err

    print("KERNEL_OK")
</pallas_src>

<mosaic_0001>
module attributes {stable_mosaic.version = 11 : i64} {
  func.func @_fused_tail_kernel(%arg0: i32, %arg1: i32, %arg2: memref<16x512xbf16, #tpu.memory_space<vmem>>, %arg3: memref<16x768xbf16, #tpu.memory_space<vmem>>, %arg4: memref<512x768xbf16, #tpu.memory_space<vmem>>, %arg5: memref<1x768xf32, #tpu.memory_space<vmem>>, %arg6: memref<1x768xf32, #tpu.memory_space<vmem>>, %arg7: memref<1x768xf32, #tpu.memory_space<vmem>>, %arg8: memref<768x128xbf16, #tpu.memory_space<vmem>>, %arg9: memref<1x128xf32, #tpu.memory_space<vmem>>, %arg10: memref<128x128xbf16, #tpu.memory_space<vmem>>, %arg11: memref<1x128xf32, #tpu.memory_space<vmem>>, %arg12: memref<128x128xbf16, #tpu.memory_space<vmem>>, %arg13: memref<1x128xf32, #tpu.memory_space<vmem>>, %arg14: memref<16x128xbf16, #tpu.memory_space<vmem>>, %arg15: memref<16x768xf32, #tpu.memory_space<vmem>>) attributes {dimension_semantics = [#tpu.dimension_semantics<parallel>, #tpu.dimension_semantics<arbitrary>], iteration_bounds = array<i64: 1, 6>, scalar_prefetch = 0 : i64, scratch_operands = 1 : i64, tpu.core_type = #tpu.core_type<tc>, window_params = [{transform_indices = @transform_0, window_bounds = array<i64: 16, 512>}, {transform_indices = @transform_1, window_bounds = array<i64: 16, 768>}, {transform_indices = @transform_2, window_bounds = array<i64: 512, 768>}, {pipeline_mode = #tpu.pipeline_mode<synchronous>, transform_indices = @transform_3, window_bounds = array<i64: 1, 768>}, {pipeline_mode = #tpu.pipeline_mode<synchronous>, transform_indices = @transform_4, window_bounds = array<i64: 1, 768>}, {pipeline_mode = #tpu.pipeline_mode<synchronous>, transform_indices = @transform_5, window_bounds = array<i64: 1, 768>}, {pipeline_mode = #tpu.pipeline_mode<synchronous>, transform_indices = @transform_6, window_bounds = array<i64: 768, 128>}, {pipeline_mode = #tpu.pipeline_mode<synchronous>, transform_indices = @transform_7, window_bounds = array<i64: 1, 128>}, {pipeline_mode = #tpu.pipeline_mode<synchronous>, transform_indices = @transform_8, window_bounds = array<i64: 128, 128>}, {pipeline_mode = #tpu.pipeline_mode<synchronous>, transform_indices = @transform_9, window_bounds = array<i64: 1, 128>}, {pipeline_mode = #tpu.pipeline_mode<synchronous>, transform_indices = @transform_10, window_bounds = array<i64: 128, 128>}, {pipeline_mode = #tpu.pipeline_mode<synchronous>, transform_indices = @transform_11, window_bounds = array<i64: 1, 128>}, {transform_indices = @transform_12, window_bounds = array<i64: 16, 128>}]} {
    %c0_i32 = arith.constant 0 : i32
    %0 = arith.cmpi eq, %arg1, %c0_i32 : i32
    %1 = arith.extui %0 : i1 to i32
    %c0_i32_0 = arith.constant 0 : i32
    %2 = arith.cmpi ne, %1, %c0_i32_0 : i32
    scf.if %2 {
      %cst_9 = arith.constant 0.000000e+00 : f32
      %12 = vector.broadcast %cst_9 : f32 to vector<16x768xf32>
      %c0_10 = arith.constant 0 : index
      %c0_11 = arith.constant 0 : index
      %13 = vector.load %arg15[%c0_10, %c0_11] : memref<16x768xf32, #tpu.memory_space<vmem>>, vector<16x768xf32>
      tpu.vector_store %arg15[%c0_10, %c0_11], %12 {strides = array<i32>} : memref<16x768xf32, #tpu.memory_space<vmem>>, vector<16x768xf32>,
    } else {
    }
    %c0 = arith.constant 0 : index
    %c0_1 = arith.constant 0 : index
    %3 = vector.load %arg15[%c0, %c0_1] : memref<16x768xf32, #tpu.memory_space<vmem>>, vector<16x768xf32>
    %c0_2 = arith.constant 0 : index
    %c0_3 = arith.constant 0 : index
    %4 = vector.load %arg2[%c0_2, %c0_3] : memref<16x512xbf16, #tpu.memory_space<vmem>>, vector<16x512xbf16>
    %c0_4 = arith.constant 0 : index
    %c0_5 = arith.constant 0 : index
    %5 = vector.load %arg4[%c0_4, %c0_5] : memref<512x768xbf16, #tpu.memory_space<vmem>>, vector<512x768xbf16>
    %cst = arith.constant dense<0.000000e+00> : vector<16x768xf32>
    %6 = tpu.matmul %4, %5, %cst {dimension_numbers = #tpu.dot_dimension_numbers<[1], [0], [0], [1], [0, 0, 1, 1], [], []>} : vector<16x512xbf16>, vector<512x768xbf16>, vector<16x768xf32> -> vector<16x768xf32>
    %7 = arith.addf %3, %6 : vector<16x768xf32>
    %c0_6 = arith.constant 0 : index
    %c0_7 = arith.constant 0 : index
    %8 = vector.load %arg15[%c0_6, %c0_7] : memref<16x768xf32, #tpu.memory_space<vmem>>, vector<16x768xf32>
    tpu.vector_store %arg15[%c0_6, %c0_7], %7 {strides = array<i32>} : memref<16x768xf32, #tpu.memory_space<vmem>>, vector<16x768xf32>,
    %c5_i32 = arith.constant 5 : i32
    %9 = arith.cmpi eq, %arg1, %c5_i32 : i32
    %10 = arith.extui %9 : i1 to i32
    %c0_i32_8 = arith.constant 0 : i32
    %11 = arith.cmpi ne, %10, %c0_i32_8 : i32
    scf.if %11 {
      %c0_9 = arith.constant 0 : index
      %c0_10 = arith.constant 0 : index
      %12 = vector.load %arg15[%c0_9, %c0_10] : memref<16x768xf32, #tpu.memory_space<vmem>>, vector<16x768xf32>
      %c0_11 = arith.constant 0 : index
      %c0_12 = arith.constant 0 : index
      %13 = vector.load %arg5[%c0_11, %c0_12] : memref<1x768xf32, #tpu.memory_space<vmem>>, vector<1x768xf32>
      %14 = vector.broadcast %13 : vector<1x768xf32> to vector<16x768xf32>
      %15 = arith.addf %12, %14 : vector<16x768xf32>
      %c0_13 = arith.constant 0 : index
      %c0_14 = arith.constant 0 : index
      %16 = vector.load %arg3[%c0_13, %c0_14] : memref<16x768xbf16, #tpu.memory_space<vmem>>, vector<16x768xbf16>
      %17 = arith.extf %16 : vector<16x768xbf16> to vector<16x768xf32>
      %18 = arith.addf %15, %17 : vector<16x768xf32>
      %cst_15 = arith.constant dense<0.000000e+00> : vector<16xf32>
      %19 = vector.multi_reduction <add>, %18, %cst_15 [1] : vector<16x768xf32> to vector<16xf32>
      %20 = vector.shape_cast %19 : vector<16xf32> to vector<16x1xf32>
      %cst_16 = arith.constant 7.680000e+02 : f32
      %21 = vector.broadcast %cst_16 : f32 to vector<16x1xf32>
      %22 = arith.divf %20, %21 : vector<16x1xf32>
      %23 = vector.broadcast %22 : vector<16x1xf32> to vector<16x768xf32>
      %24 = arith.subf %18, %23 : vector<16x768xf32>
      %25 = arith.mulf %24, %24 : vector<16x768xf32>
      %cst_17 = arith.constant dense<0.000000e+00> : vector<16xf32>
      %26 = vector.multi_reduction <add>, %25, %cst_17 [1] : vector<16x768xf32> to vector<16xf32>
      %27 = vector.shape_cast %26 : vector<16xf32> to vector<16x1xf32>
      %cst_18 = arith.constant 7.680000e+02 : f32
      %28 = vector.broadcast %cst_18 : f32 to vector<16x1xf32>
      %29 = arith.divf %27, %28 : vector<16x1xf32>
      %cst_19 = arith.constant 9.99999996E-13 : f32
      %30 = vector.broadcast %cst_19 : f32 to vector<16x1xf32>
      %31 = arith.addf %29, %30 : vector<16x1xf32>
      %32 = math.rsqrt %31 : vector<16x1xf32>
      %33 = vector.broadcast %32 : vector<16x1xf32> to vector<16x768xf32>
      %34 = arith.mulf %24, %33 : vector<16x768xf32>
      %c0_20 = arith.constant 0 : index
      %c0_21 = arith.constant 0 : index
      %35 = vector.load %arg6[%c0_20, %c0_21] : memref<1x768xf32, #tpu.memory_space<vmem>>, vector<1x768xf32>
      %36 = vector.broadcast %35 : vector<1x768xf32> to vector<16x768xf32>
      %37 = arith.mulf %34, %36 : vector<16x768xf32>
      %c0_22 = arith.constant 0 : index
      %c0_23 = arith.constant 0 : index
      %38 = vector.load %arg7[%c0_22, %c0_23] : memref<1x768xf32, #tpu.memory_space<vmem>>, vector<1x768xf32>
      %39 = vector.broadcast %38 : vector<1x768xf32> to vector<16x768xf32>
      %40 = arith.addf %37, %39 : vector<16x768xf32>
      %41 = arith.truncf %40 : vector<16x768xf32> to vector<16x768xbf16>
      %c0_24 = arith.constant 0 : index
      %c0_25 = arith.constant 0 : index
      %42 = vector.load %arg8[%c0_24, %c0_25] : memref<768x128xbf16, #tpu.memory_space<vmem>>, vector<768x128xbf16>
      %cst_26 = arith.constant dense<0.000000e+00> : vector<16x128xf32>
      %43 = tpu.matmul %41, %42, %cst_26 {dimension_numbers = #tpu.dot_dimension_numbers<[1], [0], [0], [1], [0, 0, 1, 1], [], []>} : vector<16x768xbf16>, vector<768x128xbf16>, vector<16x128xf32> -> vector<16x128xf32>
      %c0_27 = arith.constant 0 : index
      %c0_28 = arith.constant 0 : index
      %44 = vector.load %arg9[%c0_27, %c0_28] : memref<1x128xf32, #tpu.memory_space<vmem>>, vector<1x128xf32>
      %45 = vector.broadcast %44 : vector<1x128xf32> to vector<16x128xf32>
      %46 = arith.addf %43, %45 : vector<16x128xf32>
      %cst_29 = arith.constant 0.000000e+00 : f32
      %47 = vector.broadcast %cst_29 : f32 to vector<16x128xf32>
      %48 = arith.maximumf %46, %47 : vector<16x128xf32>
      %49 = arith.truncf %48 : vector<16x128xf32> to vector<16x128xbf16>
      %c0_30 = arith.constant 0 : index
      %c0_31 = arith.constant 0 : index
      %50 = vector.load %arg10[%c0_30, %c0_31] : memref<128x128xbf16, #tpu.memory_space<vmem>>, vector<128x128xbf16>
      %cst_32 = arith.constant dense<0.000000e+00> : vector<16x128xf32>
      %51 = tpu.matmul %49, %50, %cst_32 {dimension_numbers = #tpu.dot_dimension_numbers<[1], [0], [0], [1], [0, 0, 1, 1], [], []>} : vector<16x128xbf16>, vector<128x128xbf16>, vector<16x128xf32> -> vector<16x128xf32>
      %c0_33 = arith.constant 0 : index
      %c0_34 = arith.constant 0 : index
      %52 = vector.load %arg11[%c0_33, %c0_34] : memref<1x128xf32, #tpu.memory_space<vmem>>, vector<1x128xf32>
      %53 = vector.broadcast %52 : vector<1x128xf32> to vector<16x128xf32>
      %54 = arith.addf %51, %53 : vector<16x128xf32>
      %cst_35 = arith.constant 0.000000e+00 : f32
      %55 = vector.broadcast %cst_35 : f32 to vector<16x128xf32>
      %56 = arith.maximumf %54, %55 : vector<16x128xf32>
      %57 = arith.truncf %56 : vector<16x128xf32> to vector<16x128xbf16>
      %c0_36 = arith.constant 0 : index
      %c0_37 = arith.constant 0 : index
      %58 = vector.load %arg12[%c0_36, %c0_37] : memref<128x128xbf16, #tpu.memory_space<vmem>>, vector<128x128xbf16>
      %cst_38 = arith.constant dense<0.000000e+00> : vector<16x128xf32>
      %59 = tpu.matmul %57, %58, %cst_38 {dimension_numbers = #tpu.dot_dimension_numbers<[1], [0], [0], [1], [0, 0, 1, 1], [], []>} : vector<16x128xbf16>, vector<128x128xbf16>, vector<16x128xf32> -> vector<16x128xf32>
      %c0_39 = arith.constant 0 : index
      %c0_40 = arith.constant 0 : index
      %60 = vector.load %arg13[%c0_39, %c0_40] : memref<1x128xf32, #tpu.memory_space<vmem>>, vector<1x128xf32>
      %61 = vector.broadcast %60 : vector<1x128xf32> to vector<16x128xf32>
      %62 = arith.addf %59, %61 : vector<16x128xf32>
      %63 = arith.truncf %62 : vector<16x128xf32> to vector<16x128xbf16>
      %c0_41 = arith.constant 0 : index
      %c0_42 = arith.constant 0 : index
      %64 = vector.load %arg14[%c0_41, %c0_42] : memref<16x128xbf16, #tpu.memory_space<vmem>>, vector<16x128xbf16>
      tpu.vector_store %arg14[%c0_41, %c0_42], %63 {strides = array<i32>} : memref<16x128xbf16, #tpu.memory_space<vmem>>, vector<16x128xbf16>,
    } else {
    }
    return
  }
  func.func @transform_0(%arg0: i32, %arg1: i32) -> (i32, i32) {
    %c0_i32 = arith.constant 0 : i32
    return %arg0, %arg1 : i32, i32
  }
  func.func @transform_1(%arg0: i32, %arg1: i32) -> (i32, i32) {
    %c0_i32 = arith.constant 0 : i32
    %c0_i32_0 = arith.constant 0 : i32
    return %arg0, %c0_i32 : i32, i32
  }
  func.func @transform_2(%arg0: i32, %arg1: i32) -> (i32, i32) {
    %c0_i32 = arith.constant 0 : i32
    %c0_i32_0 = arith.constant 0 : i32
    return %arg1, %c0_i32 : i32, i32
  }
  func.func @transform_3(%arg0: i32, %arg1: i32) -> (i32, i32) {
    %c0_i32 = arith.constant 0 : i32
    %c0_i32_0 = arith.constant 0 : i32
    %c0_i32_1 = arith.constant 0 : i32
    return %c0_i32, %c0_i32_0 : i32, i32
  }
  func.func @transform_4(%arg0: i32, %arg1: i32) -> (i32, i32) {
    %c0_i32 = arith.constant 0 : i32
    %c0_i32_0 = arith.constant 0 : i32
    %c0_i32_1 = arith.constant 0 : i32
    return %c0_i32, %c0_i32_0 : i32, i32
  }
  func.func @transform_5(%arg0: i32, %arg1: i32) -> (i32, i32) {
    %c0_i32 = arith.constant 0 : i32
    %c0_i32_0 = arith.constant 0 : i32
    %c0_i32_1 = arith.constant 0 : i32
    return %c0_i32, %c0_i32_0 : i32, i32
  }
  func.func @transform_6(%arg0: i32, %arg1: i32) -> (i32, i32) {
    %c0_i32 = arith.constant 0 : i32
    %c0_i32_0 = arith.constant 0 : i32
    %c0_i32_1 = arith.constant 0 : i32
    return %c0_i32, %c0_i32_0 : i32, i32
  }
  func.func @transform_7(%arg0: i32, %arg1: i32) -> (i32, i32) {
    %c0_i32 = arith.constant 0 : i32
    %c0_i32_0 = arith.constant 0 : i32
    %c0_i32_1 = arith.constant 0 : i32
    return %c0_i32, %c0_i32_0 : i32, i32
  }
  func.func @transform_8(%arg0: i32, %arg1: i32) -> (i32, i32) {
    %c0_i32 = arith.constant 0 : i32
    %c0_i32_0 = arith.constant 0 : i32
    %c0_i32_1 = arith.constant 0 : i32
    return %c0_i32, %c0_i32_0 : i32, i32
  }
  func.func @transform_9(%arg0: i32, %arg1: i32) -> (i32, i32) {
    %c0_i32 = arith.constant 0 : i32
    %c0_i32_0 = arith.constant 0 : i32
    %c0_i32_1 = arith.constant 0 : i32
    return %c0_i32, %c0_i32_0 : i32, i32
  }
  func.func @transform_10(%arg0: i32, %arg1: i32) -> (i32, i32) {
    %c0_i32 = arith.constant 0 : i32
    %c0_i32_0 = arith.constant 0 : i32
    %c0_i32_1 = arith.constant 0 : i32
    return %c0_i32, %c0_i32_0 : i32, i32
  }
  func.func @transform_11(%arg0: i32, %arg1: i32) -> (i32, i32) {
    %c0_i32 = arith.constant 0 : i32
    %c0_i32_0 = arith.constant 0 : i32
    %c0_i32_1 = arith.constant 0 : i32
    return %c0_i32, %c0_i32_0 : i32, i32
  }
  func.func @transform_12(%arg0: i32, %arg1: i32) -> (i32, i32) {
    %c0_i32 = arith.constant 0 : i32
    %c0_i32_0 = arith.constant 0 : i32
    return %arg0, %c0_i32 : i32, i32
  }
}

</mosaic_0001>

<llo_original>
// kernel: custom_bert_forward.1
$region0: #{custom_bert_forward.1}
  #allocation0 [shape = 'u32[]', space=smem, size = 0x4, offset = 0x4, fixed_abs, tag = 'smem constant byte address 0x4 - core index']
  #allocation1 [shape = 'u32[72,128]{1,0:T(1,128)}', space=vmem, size = 0x9000, scoped, tag = 'internal scratch']
  #allocation2 [shape = 'f32[16,768]{1,0:T(8,128)}', space=vmem, size = 0xc000, scoped, tag = 'scratch operand']
  %s0 = inlined_call_operand.vmem [shape: bf16[16,3072], index: 0, kind: input, shape index: {}]
  %s1 = inlined_call_operand.vmem [shape: bf16[16,768], index: 1, kind: input, shape index: {}]
  %s2 = inlined_call_operand.vmem [shape: bf16[3072,768], index: 2, kind: input, shape index: {}]
  %s3 = inlined_call_operand.vmem [shape: f32[1,768], index: 3, kind: input, shape index: {}]
  %s4 = inlined_call_operand.vmem [shape: f32[1,768], index: 4, kind: input, shape index: {}]
  %s5 = inlined_call_operand.vmem [shape: f32[1,768], index: 5, kind: input, shape index: {}]
  %s6 = inlined_call_operand.vmem [shape: bf16[768,128], index: 6, kind: input, shape index: {}]
  %s7 = inlined_call_operand.vmem [shape: f32[1,128], index: 7, kind: input, shape index: {}]
  %s8 = inlined_call_operand.vmem [shape: bf16[128,128], index: 8, kind: input, shape index: {}]
  %s9 = inlined_call_operand.vmem [shape: f32[1,128], index: 9, kind: input, shape index: {}]
  %s10 = inlined_call_operand.vmem [shape: bf16[128,128], index: 10, kind: input, shape index: {}]
  %s11 = inlined_call_operand.vmem [shape: f32[1,128], index: 11, kind: input, shape index: {}]
  %s12 = inlined_call_operand.vmem [shape: bf16[16,128], index: 12, kind: output, shape index: {}]
  %s13 = sld [smem:[#allocation0]]
  $region112: #{custom_bert_forward.1} parent=0
    _
  %s15 = ssub.s32 1, %s13
  %s16 = scalar_select 0, %s15, %s13
  $region1: #{custom_bert_forward.1} parent=0
    #allocation3 [shape = 'u8[32768]{0}', space=vmem, size = 0x8000, scoped, tag = 'input window, operand 0']
    loop: start=0, step=1, limit=8
    $region2: #{custom_bert_forward.1} parent=1 // loop_pre_header
      _
    $region3: #{custom_bert_forward.1} parent=1 // loop_header
      %s18 = sphi 0, %s22
      %p19 = scmp.ge.s32.totalorder %s18, 8
      %s25 = sphi 0, %s37
      %s26 = sphi 0, %s33
      %s27 = sphi 0, %s25
      %s28 = sphi 0, %s26
      %s29 = sphi 0, %s27
      %s30 = sphi 0, %s28
      %s42 = sphi 0, %s44
      %s45 = sphi 0, %s42
      %s46 = sphi 0, %s45
      %s62 = sphi 0, %s46
      %s68 = sphi 0, %s70
      %s71 = sphi 0, %s68
      %s72 = sphi 0, %s71
      %s88 = sphi 0, %s72
      %s94 = sphi 0, %s96
      %s97 = sphi 0, %s94
      %s98 = sphi 0, %s97
      %s114 = sphi 0, %s98
      %s118 = sphi 0, %s118
      %s120 = sphi 0, %s118
      %s121 = sphi 0, %s120
      %s135 = sphi 0, %s121
      %s139 = sphi 0, %s139
      %s141 = sphi 0, %s139
      %s142 = sphi 0, %s141
      %s156 = sphi 0, %s142
      %s160 = sphi 0, %s160
      %s162 = sphi 0, %s160
      %s163 = sphi 0, %s162
      %s177 = sphi 0, %s163
      %s181 = sphi 0, %s181
      %s183 = sphi 0, %s181
      %s184 = sphi 0, %s183
      %s198 = sphi 0, %s184
      %s202 = sphi 0, %s202
      %s204 = sphi 0, %s202
      %s205 = sphi 0, %s204
      %s219 = sphi 0, %s205
      %s223 = sphi 0, %s223
      %s225 = sphi 0, %s223
      %s226 = sphi 0, %s225
      %s240 = sphi 0, %s226
      %s244 = sphi 0, %s244
      %s246 = sphi 0, %s244
      %s247 = sphi 0, %s246
      %s261 = sphi 0, %s247
      %s265 = sphi 0, %s265
      %s267 = sphi 0, %s265
      %s268 = sphi 0, %s267
      %s282 = sphi 0, %s268
      %s286 = sphi 0, %s286
      %s288 = sphi 0, %s286
      %s289 = sphi 0, %s288
      %s303 = sphi 0, %s289
      %s309 = sphi 0, %s311
      %s312 = sphi 0, %s309
      %s313 = sphi 0, %s312
      %s329 = sphi 0, %s313
    $region4: #{custom_bert_forward.1} parent=1 // loop_header_branch
      %21 = sbr.rel (%p19) target = $region8
    $region5: #{custom_bert_forward.1} parent=1 // loop_body
      %s23 = ssub.s32 %s18, 1
      %s24 = ssub.s32 %s18, 2
      %s31 = sadd.s32 1, %s26
      %p32 = scmp.ge.s32.totalorder %s31, 6
      %s33 = scalar_select %p32, 0, %s31
      %s34 = sadd.s32 1, %s25
      %s35 = scalar_select %p32, %s34, %s25
      %p36 = scmp.ge.s32.totalorder %s35, 1
      %s37 = scalar_select %p36, 0, %s35
      %s38 = ssub.s32 %s25, %s37
      %s39 = ssub.s32 %s26, %s33
      %s40 = sor.u32 %s38, %s39
      %p41 = scmp.eq.s32.totalorder %s40, 0
      %s43 = sadd.s32 %s42, 1
      %s44 = scalar_select %p41, %s42, %s43
      %p47 = pneg %p41
      %p48 = scmp.eq.s32.totalorder %s18, 5
      %p49 = por %p47, %p48
      %p50 = scmp.ne.s32.totalorder %s42, %s45
      %p51 = scmp.eq.s32.totalorder %s18, 0
      %p52 = por %p50, %p51
      %p53 = scmp.ne.s32.totalorder %s42, %s45
      %p54 = scmp.eq.s32.totalorder %s23, 5
      %p55 = por %p53, %p54
      %p56 = scmp.ne.s32.totalorder %s45, %s46
      %p57 = scmp.eq.s32.totalorder %s23, 0
      %p58 = por %p56, %p57
      %p59 = scmp.ne.s32.totalorder %s45, %s46
      %p60 = scmp.eq.s32.totalorder %s24, 5
      %p61 = por %p59, %p60
      %p63 = scmp.ne.s32.totalorder %s46, %s62
      %p64 = scmp.eq.s32.totalorder %s24, 0
      %p65 = por %p63, %p64
      %s66 = ssub.s32 %s25, %s37
      %p67 = scmp.eq.s32.totalorder %s66, 0
      %s69 = sadd.s32 %s68, 1
      %s70 = scalar_select %p67, %s68, %s69
      %p73 = pneg %p67
      %p74 = scmp.eq.s32.totalorder %s18, 5
      %p75 = por %p73, %p74
      %p76 = scmp.ne.s32.totalorder %s68, %s71
      %p77 = scmp.eq.s32.totalorder %s18, 0
      %p78 = por %p76, %p77
      %p79 = scmp.ne.s32.totalorder %s68, %s71
      %p80 = scmp.eq.s32.totalorder %s23, 5
      %p81 = por %p79, %p80
      %p82 = scmp.ne.s32.totalorder %s71, %s72
      %p83 = scmp.eq.s32.totalorder %s23, 0
      %p84 = por %p82, %p83
      %p85 = scmp.ne.s32.totalorder %s71, %s72
      %p86 = scmp.eq.s32.totalorder %s24, 5
      %p87 = por %p85, %p86
      %p89 = scmp.ne.s32.totalorder %s72, %s88
      %p90 = scmp.eq.s32.totalorder %s24, 0
      %p91 = por %p89, %p90
      %s92 = ssub.s32 %s26, %s33
      %p93 = scmp.eq.s32.totalorder %s92, 0
      %s95 = sadd.s32 %s94, 1
      %s96 = scalar_select %p93, %s94, %s95
      %p99 = pneg %p93
      %p100 = scmp.eq.s32.totalorder %s18, 5
      %p101 = por %p99, %p100
      %p102 = scmp.ne.s32.totalorder %s94, %s97
      %p103 = scmp.eq.s32.totalorder %s18, 0
      %p104 = por %p102, %p103
      %p105 = scmp.ne.s32.totalorder %s94, %s97
      %p106 = scmp.eq.s32.totalorder %s23, 5
      %p107 = por %p105, %p106
      %p108 = scmp.ne.s32.totalorder %s97, %s98
      %p109 = scmp.eq.s32.totalorder %s23, 0
      %p110 = por %p108, %p109
      %p111 = scmp.ne.s32.totalorder %s97, %s98
      %p112 = scmp.eq.s32.totalorder %s24, 5
      %p113 = por %p111, %p112
      %p115 = scmp.ne.s32.totalorder %s98, %s114
      %p116 = scmp.eq.s32.totalorder %s24, 0
      %p117 = por %p115, %p116
      %s119 = sadd.s32 %s118, 1
      %p122 = scmp.eq.s32.totalorder %s18, 5
      %p123 = scmp.ne.s32.totalorder %s118, %s120
      %p124 = scmp.eq.s32.totalorder %s18, 0
      %p125 = por %p123, %p124
      %p126 = scmp.ne.s32.totalorder %s118, %s120
      %p127 = scmp.eq.s32.totalorder %s23, 5
      %p128 = por %p126, %p127
      %p129 = scmp.ne.s32.totalorder %s120, %s121
      %p130 = scmp.eq.s32.totalorder %s23, 0
      %p131 = por %p129, %p130
      %p132 = scmp.ne.s32.totalorder %s120, %s121
      %p133 = scmp.eq.s32.totalorder %s24, 5
      %p134 = por %p132, %p133
      %p136 = scmp.ne.s32.totalorder %s121, %s135
      %p137 = scmp.eq.s32.totalorder %s24, 0
      %p138 = por %p136, %p137
      %s140 = sadd.s32 %s139, 1
      %p143 = scmp.eq.s32.totalorder %s18, 5
      %p144 = scmp.ne.s32.totalorder %s139, %s141
      %p145 = scmp.eq.s32.totalorder %s18, 0
      %p146 = por %p144, %p145
      %p147 = scmp.ne.s32.totalorder %s139, %s141
      %p148 = scmp.eq.s32.totalorder %s23, 5
      %p149 = por %p147, %p148
      %p150 = scmp.ne.s32.totalorder %s141, %s142
      %p151 = scmp.eq.s32.totalorder %s23, 0
      %p152 = por %p150, %p151
      %p153 = scmp.ne.s32.totalorder %s141, %s142
      %p154 = scmp.eq.s32.totalorder %s24, 5
      %p155 = por %p153, %p154
      %p157 = scmp.ne.s32.totalorder %s142, %s156
      %p158 = scmp.eq.s32.totalorder %s24, 0
      %p159 = por %p157, %p158
      %s161 = sadd.s32 %s160, 1
      %p164 = scmp.eq.s32.totalorder %s18, 5
      %p165 = scmp.ne.s32.totalorder %s160, %s162
      %p166 = scmp.eq.s32.totalorder %s18, 0
      %p167 = por %p165, %p166
      %p168 = scmp.ne.s32.totalorder %s160, %s162
      %p169 = scmp.eq.s32.totalorder %s23, 5
      %p170 = por %p168, %p169
      %p171 = scmp.ne.s32.totalorder %s162, %s163
      %p172 = scmp.eq.s32.totalorder %s23, 0
      %p173 = por %p171, %p172
      %p174 = scmp.ne.s32.totalorder %s162, %s163
      %p175 = scmp.eq.s32.totalorder %s24, 5
      %p176 = por %p174, %p175
      %p178 = scmp.ne.s32.totalorder %s163, %s177
      %p179 = scmp.eq.s32.totalorder %s24, 0
      %p180 = por %p178, %p179
      %s182 = sadd.s32 %s181, 1
      %p185 = scmp.eq.s32.totalorder %s18, 5
      %p186 = scmp.ne.s32.totalorder %s181, %s183
      %p187 = scmp.eq.s32.totalorder %s18, 0
      %p188 = por %p186, %p187
      %p189 = scmp.ne.s32.totalorder %s181, %s183
      %p190 = scmp.eq.s32.totalorder %s23, 5
      %p191 = por %p189, %p190
      %p192 = scmp.ne.s32.totalorder %s183, %s184
      %p193 = scmp.eq.s32.totalorder %s23, 0
      %p194 = por %p192, %p193
      %p195 = scmp.ne.s32.totalorder %s183, %s184
      %p196 = scmp.eq.s32.totalorder %s24, 5
      %p197 = por %p195, %p196
      %p199 = scmp.ne.s32.totalorder %s184, %s198
      %p200 = scmp.eq.s32.totalorder %s24, 0
      %p201 = por %p199, %p200
      %s203 = sadd.s32 %s202, 1
      %p206 = scmp.eq.s32.totalorder %s18, 5
      %p207 = scmp.ne.s32.totalorder %s202, %s204
      %p208 = scmp.eq.s32.totalorder %s18, 0
      %p209 = por %p207, %p208
      %p210 = scmp.ne.s32.totalorder %s202, %s204
      %p211 = scmp.eq.s32.totalorder %s23, 5
      %p212 = por %p210, %p211
      %p213 = scmp.ne.s32.totalorder %s204, %s205
      %p214 = scmp.eq.s32.totalorder %s23, 0
      %p215 = por %p213, %p214
      %p216 = scmp.ne.s32.totalorder %s204, %s205
      %p217 = scmp.eq.s32.totalorder %s24, 5
      %p218 = por %p216, %p217
      %p220 = scmp.ne.s32.totalorder %s205, %s219
      %p221 = scmp.eq.s32.totalorder %s24, 0
      %p222 = por %p220, %p221
      %s224 = sadd.s32 %s223, 1
      %p227 = scmp.eq.s32.totalorder %s18, 5
      %p228 = scmp.ne.s32.totalorder %s223, %s225
      %p229 = scmp.eq.s32.totalorder %s18, 0
      %p230 = por %p228, %p229
      %p231 = scmp.ne.s32.totalorder %s223, %s225
      %p232 = scmp.eq.s32.totalorder %s23, 5
      %p233 = por %p231, %p232
      %p234 = scmp.ne.s32.totalorder %s225, %s226
      %p235 = scmp.eq.s32.totalorder %s23, 0
      %p236 = por %p234, %p235
      %p237 = scmp.ne.s32.totalorder %s225, %s226
      %p238 = scmp.eq.s32.totalorder %s24, 5
      %p239 = por %p237, %p238
      %p241 = scmp.ne.s32.totalorder %s226, %s240
      %p242 = scmp.eq.s32.totalorder %s24, 0
      %p243 = por %p241, %p242
      %s245 = sadd.s32 %s244, 1
      %p248 = scmp.eq.s32.totalorder %s18, 5
      %p249 = scmp.ne.s32.totalorder %s244, %s246
      %p250 = scmp.eq.s32.totalorder %s18, 0
      %p251 = por %p249, %p250
      %p252 = scmp.ne.s32.totalorder %s244, %s246
      %p253 = scmp.eq.s32.totalorder %s23, 5
      %p254 = por %p252, %p253
      %p255 = scmp.ne.s32.totalorder %s246, %s247
      %p256 = scmp.eq.s32.totalorder %s23, 0
      %p257 = por %p255, %p256
      %p258 = scmp.ne.s32.totalorder %s246, %s247
      %p259 = scmp.eq.s32.totalorder %s24, 5
      %p260 = por %p258, %p259
      %p262 = scmp.ne.s32.totalorder %s247, %s261
      %p263 = scmp.eq.s32.totalorder %s24, 0
      %p264 = por %p262, %p263
      %s266 = sadd.s32 %s265, 1
      %p269 = scmp.eq.s32.totalorder %s18, 5
      %p270 = scmp.ne.s32.totalorder %s265, %s267
      %p271 = scmp.eq.s32.totalorder %s18, 0
      %p272 = por %p270, %p271
      %p273 = scmp.ne.s32.totalorder %s265, %s267
      %p274 = scmp.eq.s32.totalorder %s23, 5
      %p275 = por %p273, %p274
      %p276 = scmp.ne.s32.totalorder %s267, %s268
      %p277 = scmp.eq.s32.totalorder %s23, 0
      %p278 = por %p276, %p277
      %p279 = scmp.ne.s32.totalorder %s267, %s268
      %p280 = scmp.eq.s32.totalorder %s24, 5
      %p281 = por %p279, %p280
      %p283 = scmp.ne.s32.totalorder %s268, %s282
      %p284 = scmp.eq.s32.totalorder %s24, 0
      %p285 = por %p283, %p284
      %s287 = sadd.s32 %s286, 1
      %p290 = scmp.eq.s32.totalorder %s18, 5
      %p291 = scmp.ne.s32.totalorder %s286, %s288
      %p292 = scmp.eq.s32.totalorder %s18, 0
      %p293 = por %p291, %p292
      %p294 = scmp.ne.s32.totalorder %s286, %s288
      %p295 = scmp.eq.s32.totalorder %s23, 5
      %p296 = por %p294, %p295
      %p297 = scmp.ne.s32.totalorder %s288, %s289
      %p298 = scmp.eq.s32.totalorder %s23, 0
      %p299 = por %p297, %p298
      %p300 = scmp.ne.s32.totalorder %s288, %s289
      %p301 = scmp.eq.s32.totalorder %s24, 5
      %p302 = por %p300, %p301
      %p304 = scmp.ne.s32.totalorder %s289, %s303
      %p305 = scmp.eq.s32.totalorder %s24, 0
      %p306 = por %p304, %p305
      %s307 = ssub.s32 %s25, %s37
      %p308 = scmp.eq.s32.totalorder %s307, 0
      %s310 = sadd.s32 %s309, 1
      %s311 = scalar_select %p308, %s309, %s310
      %p314 = pneg %p308
      %p315 = scmp.eq.s32.totalorder %s18, 5
      %p316 = por %p314, %p315
      %p317 = scmp.ne.s32.totalorder %s309, %s312
      %p318 = scmp.eq.s32.totalorder %s18, 0
      %p319 = por %p317, %p318
      %p320 = scmp.ne.s32.totalorder %s309, %s312
      %p321 = scmp.eq.s32.totalorder %s23, 5
      %p322 = por %p320, %p321
      %p323 = scmp.ne.s32.totalorder %s312, %s313
      %p324 = scmp.eq.s32.totalorder %s23, 0
      %p325 = por %p323, %p324
      %p326 = scmp.ne.s32.totalorder %s312, %s313
      %p327 = scmp.eq.s32.totalorder %s24, 5
      %p328 = por %p326, %p327
      %p330 = scmp.ne.s32.totalorder %s313, %s329
      %p331 = scmp.eq.s32.totalorder %s24, 0
      %p332 = por %p330, %p331
      %p333 = scmp.le.s32.totalorder 1, %s18
      %p334 = scmp.lt.s32.totalorder %s18, 7
      %p335 = pnand %p333, %p334
      %p336 = pneg %p335
      // Predicated region
      $region9: #{custom_bert_forward.1} parent=5 // pred_check
        _
      $region10: #{custom_bert_forward.1} parent=5 // pred_check_branch
        %338 = sbr.rel (%p335) target = $region12
      $region11: #{custom_bert_forward.1} parent=5 // pred_region
        %s339 = ssub.s32 %s18, 1
        // Predicated region
        $region13: #{custom_bert_forward.1} parent=11 // pred_check
          %p340 = pneg %p84
        $region14: #{custom_bert_forward.1} parent=11 // pred_check_branch
          %342 = sbr.rel (%p340) target = $region16
        $region15: #{custom_bert_forward.1} parent=11 // pred_region
          %s343 = smul.u32 2, %s27
          %p344 = scmp.lt.s32.totalorder %s343, 1
          %s345 = scalar_select %p344, %s343, 1
          %s346 = smul.addr %s345, 6
          %s347 = smul.addr %s346, 4
          %s348 = scalar_lea.vmem %s1, %s347
          %s349 = smul.u32 2, %s27
        $region16: #{custom_bert_forward.1} parent=11 // pred_fallthru
          _
        // Predicated region
        $region17: #{custom_bert_forward.1} parent=11 // pred_check
          %p350 = pneg %p131
        $region18: #{custom_bert_forward.1} parent=11 // pred_check_branch
          %352 = sbr.rel (%p350) target = $region20
        $region19: #{custom_bert_forward.1} parent=11 // pred_region
          _
        $region20: #{custom_bert_forward.1} parent=11 // pred_fallthru
          _
        // Predicated region
        $region21: #{custom_bert_forward.1} parent=11 // pred_check
          %p353 = pneg %p152
        $region22: #{custom_bert_forward.1} parent=11 // pred_check_branch
          %355 = sbr.rel (%p353) target = $region24
        $region23: #{custom_bert_forward.1} parent=11 // pred_region
          _
        $region24: #{custom_bert_forward.1} parent=11 // pred_fallthru
          _
        // Predicated region
        $region25: #{custom_bert_forward.1} parent=11 // pred_check
          %p356 = pneg %p173
        $region26: #{custom_bert_forward.1} parent=11 // pred_check_branch
          %358 = sbr.rel (%p356) target = $region28
        $region27: #{custom_bert_forward.1} parent=11 // pred_region
          _
        $region28: #{custom_bert_forward.1} parent=11 // pred_fallthru
          _
        // Predicated region
        $region29: #{custom_bert_forward.1} parent=11 // pred_check
          %p359 = pneg %p194
        $region30: #{custom_bert_forward.1} parent=11 // pred_check_branch
          %361 = sbr.rel (%p359) target = $region32
        $region31: #{custom_bert_forward.1} parent=11 // pred_region
          _
        $region32: #{custom_bert_forward.1} parent=11 // pred_fallthru
          _
        // Predicated region
        $region33: #{custom_bert_forward.1} parent=11 // pred_check
          %p362 = pneg %p215
        $region34: #{custom_bert_forward.1} parent=11 // pred_check_branch
          %364 = sbr.rel (%p362) target = $region36
        $region35: #{custom_bert_forward.1} parent=11 // pred_region
          _
        $region36: #{custom_bert_forward.1} parent=11 // pred_fallthru
          _
        // Predicated region
        $region37: #{custom_bert_forward.1} parent=11 // pred_check
          %p365 = pneg %p236
        $region38: #{custom_bert_forward.1} parent=11 // pred_check_branch
          %367 = sbr.rel (%p365) target = $region40
        $region39: #{custom_bert_forward.1} parent=11 // pred_region
          _
        $region40: #{custom_bert_forward.1} parent=11 // pred_fallthru
          _
        // Predicated region
        $region41: #{custom_bert_forward.1} parent=11 // pred_check
          %p368 = pneg %p257
        $region42: #{custom_bert_forward.1} parent=11 // pred_check_branch
          %370 = sbr.rel (%p368) target = $region44
        $region43: #{custom_bert_forward.1} parent=11 // pred_region
          _
        $region44: #{custom_bert_forward.1} parent=11 // pred_fallthru
          _
        // Predicated region
        $region45: #{custom_bert_forward.1} parent=11 // pred_check
          %p371 = pneg %p278
        $region46: #{custom_bert_forward.1} parent=11 // pred_check_branch
          %373 = sbr.rel (%p371) target = $region48
        $region47: #{custom_bert_forward.1} parent=11 // pred_region
          _
        $region48: #{custom_bert_forward.1} parent=11 // pred_fallthru
          _
        // Predicated region
        $region49: #{custom_bert_forward.1} parent=11 // pred_check
          %p374 = pneg %p299
        $region50: #{custom_bert_forward.1} parent=11 // pred_check_branch
          %376 = sbr.rel (%p374) target = $region52
        $region51: #{custom_bert_forward.1} parent=11 // pred_region
          _
        $region52: #{custom_bert_forward.1} parent=11 // pred_fallthru
          _
      $region12: #{custom_bert_forward.1} parent=5 // pred_fallthru
        _
      %p377 = scmp.lt.s32.totalorder %s18, 6
      // Predicated region
      $region53: #{custom_bert_forward.1} parent=5 // pred_check
        %p378 = pneg %p377
      $region54: #{custom_bert_forward.1} parent=5 // pred_check_branch
        %380 = sbr.rel (%p378) target = $region56
      $region55: #{custom_bert_forward.1} parent=5 // pred_region
        // Predicated region
        $region57: #{custom_bert_forward.1} parent=55 // pred_check
          %p381 = pneg %p52
        $region58: #{custom_bert_forward.1} parent=55 // pred_check_branch
          %383 = sbr.rel (%p381) target = $region60
        $region59: #{custom_bert_forward.1} parent=55 // pred_region
          %s384 = sand.u32 %s42, 1
          %s385 = sand.u32 %s42, 1
          %s386 = smul.addr %s385, 32
          %s387 = scalar_lea.vmem [#allocation3], %s386
          %s388 = smul.u32 2, %s25
          %s389 = smul.u32 4, %s26
          %s390 = smul.addr %s388, 24
          %s391 = sadd.s32 %s389, %s390
          %s392 = smul.addr %s391, 4
          %s393 = scalar_lea.vmem %s0, %s392
          // Predicated region
          $region61: #{custom_bert_forward.1} parent=59 // pred_check
            _
          $region62: #{custom_bert_forward.1} parent=59 // pred_check_branch
            %395 = sbr.rel (0) target = $region64
          $region63: #{custom_bert_forward.1} parent=59 // pred_region
            // Predicated region
            $region65: #{custom_bert_forward.1} parent=63 // pred_check
              _
            $region66: #{custom_bert_forward.1} parent=63 // pred_check_branch
              %397 = sbr.rel (0) target = $region68
            $region67: #{custom_bert_forward.1} parent=63 // pred_region
              loop: start=0, step=1, limit=1
              $region69: #{custom_bert_forward.1} parent=67 // loop_pre_header
                _
              $region70: #{custom_bert_forward.1} parent=67 // loop_header
                %s399 = sphi 0, %s403
                %p400 = scmp.ge.s32.totalorder %s399, 1
                %s404 = sphi %s393, %s393
                %s405 = sphi %s387, %s387
              $region71: #{custom_bert_forward.1} parent=67 // loop_header_branch
                %402 = sbr.rel (%p400) target = $region75
              $region72: #{custom_bert_forward.1} parent=67 // loop_body
                %v406 = vld [vmem:[%s404] sm:$0xff]
                %407 = vst [vmem:[%s405] sm:$0xff] %v406
                %v408 = vld [vmem:[%s404 + $0x8] sm:$0xff]
                %409 = vst [vmem:[%s405 + $0x8] sm:$0xff] %v408
                %v410 = vld [vmem:[%s404 + $0x60] sm:$0xff]
                %411 = vst [vmem:[%s405 + $0x10] sm:$0xff] %v410
                %v412 = vld [vmem:[%s404 + $0x68] sm:$0xff]
                %413 = vst [vmem:[%s405 + $0x18] sm:$0xff] %v412
              $region73: #{custom_bert_forward.1} parent=67 // loop_footer
                %s403 = sadd.s32 1, %s399
              $region74: #{custom_bert_forward.1} parent=67 // loop_footer_branch
                %398 = sbr.rel target = $region70
              $region75: #{custom_bert_forward.1} parent=67 // loop_exit
                _
            $region68: #{custom_bert_forward.1} parent=63 // pred_fallthru
              _
            // Predicated region
            $region76: #{custom_bert_forward.1} parent=63 // pred_check
              _
            $region77: #{custom_bert_forward.1} parent=63 // pred_check_branch
              %415 = sbr.rel target = $region79
            $region78: #{custom_bert_forward.1} parent=63 // pred_region
              _
            $region79: #{custom_bert_forward.1} parent=63 // pred_fallthru
              _
          $region64: #{custom_bert_forward.1} parent=59 // pred_fallthru
            _
          %416 = vnop
        $region60: #{custom_bert_forward.1} parent=55 // pred_fallthru
          _
        // Predicated region
        $region80: #{custom_bert_forward.1} parent=55 // pred_check
          %p417 = pneg %p104
        $region81: #{custom_bert_forward.1} parent=55 // pred_check_branch
          %419 = sbr.rel (%p417) target = $region83
        $region82: #{custom_bert_forward.1} parent=55 // pred_region
          %s420 = smul.u32 64, %s26
          %p421 = scmp.lt.s32.totalorder %s420, 383
          %s422 = scalar_select %p421, %s420, 383
          %s423 = smul.addr %s422, 6
          %s424 = smul.addr %s423, 4
          %s425 = scalar_lea.vmem %s2, %s424
          %s426 = smul.u32 64, %s26
        $region83: #{custom_bert_forward.1} parent=55 // pred_fallthru
          _
      $region56: #{custom_bert_forward.1} parent=5 // pred_fallthru
        _
      %p427 = scmp.le.s32.totalorder 1, %s18
      %p428 = scmp.lt.s32.totalorder %s18, 7
      %p429 = pnand %p427, %p428
      %p430 = pneg %p429
      // Predicated region
      $region84: #{custom_bert_forward.1} parent=5 // pred_check
        _
      $region85: #{custom_bert_forward.1} parent=5 // pred_check_branch
        %432 = sbr.rel (%p429) target = $region87
      $region86: #{custom_bert_forward.1} parent=5 // pred_region
        %s433 = ssub.s32 %s18, 1
        %s434 = sand.u32 %s45, 1
        %s435 = sand.u32 %s45, 1
        %s436 = smul.addr %s435, 32
        %s437 = scalar_lea.vmem [#allocation3], %s436
        // Predicated region
        $region88: #{custom_bert_forward.1} parent=86 // pred_check
          %p438 = pneg %p58
        $region89: #{custom_bert_forward.1} parent=86 // pred_check_branch
          %440 = sbr.rel (%p438) target = $region91
        $region90: #{custom_bert_forward.1} parent=86 // pred_region
          _
        $region91: #{custom_bert_forward.1} parent=86 // pred_fallthru
          _
        %s441 = sand.u32 %s45, 1
        %s442 = sand.u32 %s45, 1
        %s443 = smul.addr %s442, 32
        %s444 = scalar_lea.vmem [#allocation3], %s443
        %p445 = pneg %p58
        %p446 = pneg %p55
        %s447 = smul.u32 2, %s27
        %p448 = scmp.lt.s32.totalorder %s447, 1
        %s449 = scalar_select %p448, %s447, 1
        %s450 = smul.addr %s449, 6
        %s451 = smul.addr %s450, 4
        %s452 = scalar_lea.vmem %s1, %s451
        %p453 = pneg %p84
        %p454 = pneg %p81
        %s455 = smul.u32 64, %s28
        %p456 = scmp.lt.s32.totalorder %s455, 383
        %s457 = scalar_select %p456, %s455, 383
        %s458 = smul.addr %s457, 6
        %s459 = smul.addr %s458, 4
        %s460 = scalar_lea.vmem %s2, %s459
        %p461 = pneg %p110
        %p462 = pneg %p107
        %p463 = pneg %p131
        %p464 = pneg %p128
        %p465 = pneg %p152
        %p466 = pneg %p149
        %p467 = pneg %p173
        %p468 = pneg %p170
        %p469 = pneg %p194
        %p470 = pneg %p191
        %p471 = pneg %p215
        %p472 = pneg %p212
        %p473 = pneg %p236
        %p474 = pneg %p233
        %p475 = pneg %p257
        %p476 = pneg %p254
        %p477 = pneg %p278
        %p478 = pneg %p275
        %p479 = pneg %p299
        %p480 = pneg %p296
        %p481 = pneg %p325
        %p482 = pneg %p322
        %s483 = smul.u32 2, %s27
        %p484 = scmp.lt.s32.totalorder %s483, 1
        %s485 = scalar_select %p484, %s483, 1
        %s486 = smul.addr %s485, 4
        %s487 = scalar_lea.vmem %s12, %s486
        %s488 = smul.u32 2, %s27
        %s489 = smul.u32 4, %s28
        %s490 = smul.u32 2, %s27
        %p491 = scmp.lt.s32.totalorder %s490, 1
        %s492 = scalar_select %p491, %s490, 1
        %s493 = smul.addr %s492, 6
        %s494 = smul.addr %s493, 4
        %s495 = scalar_lea.vmem %s1, %s494
        %s496 = smul.u32 2, %s27
        %s497 = smul.u32 64, %s28
        %p498 = scmp.lt.s32.totalorder %s497, 383
        %s499 = scalar_select %p498, %s497, 383
        %s500 = smul.addr %s499, 6
        %s501 = smul.addr %s500, 4
        %s502 = scalar_lea.vmem %s2, %s501
        %s503 = smul.u32 64, %s28
        %s504 = smul.u32 2, %s27
        %p505 = scmp.lt.s32.totalorder %s504, 1
        %s506 = scalar_select %p505, %s504, 1
        %s507 = smul.addr %s506, 4
        %s508 = scalar_lea.vmem %s12, %s507
        %s509 = smul.u32 2, %s27
        %p510 = scmp.eq.s32.totalorder %s28, 0
        // Predicated region
        $region92: #{custom_bert_forward.1} parent=86 // pred_check
          %p511 = pneg %p510
        $region93: #{custom_bert_forward.1} parent=86 // pred_check_branch
          %513 = sbr.rel (%p511) target = $region95
        $region94: #{custom_bert_forward.1} parent=86 // pred_region
          %514 = vst [vmem:[#allocation2] sm:$0xff] 0.0
          %515 = vst [vmem:[#allocation2 + $0x8] sm:$0xff] 0.0
          %516 = vst [vmem:[#allocation2 + $0x10] sm:$0xff] 0.0
          %517 = vst [vmem:[#allocation2 + $0x18] sm:$0xff] 0.0
          %518 = vst [vmem:[#allocation2 + $0x20] sm:$0xff] 0.0
          %519 = vst [vmem:[#allocation2 + $0x28] sm:$0xff] 0.0
          %520 = vst [vmem:[#allocation2 + $0x30] sm:$0xff] 0.0
          %521 = vst [vmem:[#allocation2 + $0x38] sm:$0xff] 0.0
          %522 = vst [vmem:[#allocation2 + $0x40] sm:$0xff] 0.0
          %523 = vst [vmem:[#allocation2 + $0x48] sm:$0xff] 0.0
          %524 = vst [vmem:[#allocation2 + $0x50] sm:$0xff] 0.0
          %525 = vst [vmem:[#allocation2 + $0x58] sm:$0xff] 0.0
        $region95: #{custom_bert_forward.1} parent=86 // pred_fallthru
          _
        %v526 = vld [vmem:[#allocation2] sm:$0xff]
        %v527 = vld [vmem:[#allocation2 + $0x8] sm:$0xff]
        %v528 = vld [vmem:[#allocation2 + $0x10] sm:$0xff]
        %v529 = vld [vmem:[#allocation2 + $0x18] sm:$0xff]
        %v530 = vld [vmem:[#allocation2 + $0x20] sm:$0xff]
        %v531 = vld [vmem:[#allocation2 + $0x28] sm:$0xff]
        %v532 = vld [vmem:[#allocation2 + $0x30] sm:$0xff]
        %v533 = vld [vmem:[#allocation2 + $0x38] sm:$0xff]
        %v534 = vld [vmem:[#allocation2 + $0x40] sm:$0xff]
        %v535 = vld [vmem:[#allocation2 + $0x48] sm:$0xff]
        %v536 = vld [vmem:[#allocation2 + $0x50] sm:$0xff]
        %v537 = vld [vmem:[#allocation2 + $0x58] sm:$0xff]
        %v538 = vld [vmem:[%s437] sm:$0xff]
        %v539 = vld [vmem:[%s437 + $0x8] sm:$0xff]
        %v540 = vld [vmem:[%s437 + $0x10] sm:$0xff]
        %v541 = vld [vmem:[%s437 + $0x18] sm:$0xff]
        %v542 = vld [vmem:[%s502] sm:$0xff]
        %v543 = vld [vmem:[%s502 + $0x8] sm:$0xff]
        %v544 = vld [vmem:[%s502 + $0x10] sm:$0xff]
        %v545 = vld [vmem:[%s502 + $0x18] sm:$0xff]
        %v546 = vld [vmem:[%s502 + $0x20] sm:$0xff]
        %v547 = vld [vmem:[%s502 + $0x28] sm:$0xff]
        %v548 = vld [vmem:[%s502 + $0x30] sm:$0xff]
        %v549 = vld [vmem:[%s502 + $0x38] sm:$0xff]
        %v550 = vld [vmem:[%s502 + $0x40] sm:$0xff]
        %v551 = vld [vmem:[%s502 + $0x48] sm:$0xff]
        %v552 = vld [vmem:[%s502 + $0x50] sm:$0xff]
        %v553 = vld [vmem:[%s502 + $0x58] sm:$0xff]
        %v554 = vld [vmem:[%s502 + $0x60] sm:$0xff]
        %v555 = vld [vmem:[%s502 + $0x68] sm:$0xff]
        %v556 = vld [vmem:[%s502 + $0x70] sm:$0xff]
        %v557 = vld [vmem:[%s502 + $0x78] sm:$0xff]
        %v558 = vld [vmem:[%s502 + $0x80] sm:$0xff]
        %v559 = vld [vmem:[%s502 + $0x88] sm:$0xff]
        %v560 = vld [vmem:[%s502 + $0x90] sm:$0xff]
        %v561 = vld [vmem:[%s502 + $0x98] sm:$0xff]
        %v562 = vld [vmem:[%s502 + $0xa0] sm:$0xff]
        %v563 = vld [vmem:[%s502 + $0xa8] sm:$0xff]
        %v564 = vld [vmem:[%s502 + $0xb0] sm:$0xff]
        %v565 = vld [vmem:[%s502 + $0xb8] sm:$0xff]
        %v566 = vld [vmem:[%s502 + $0xc0] sm:$0xff]
        %v567 = vld [vmem:[%s502 + $0xc8] sm:$0xff]
        %v568 = vld [vmem:[%s502 + $0xd0] sm:$0xff]
        %v569 = vld [vmem:[%s502 + $0xd8] sm:$0xff]
        %v570 = vld [vmem:[%s502 + $0xe0] sm:$0xff]
        %v571 = vld [vmem:[%s502 + $0xe8] sm:$0xff]
        %v572 = vld [vmem:[%s502 + $0xf0] sm:$0xff]
        %v573 = vld [vmem:[%s502 + $0xf8] sm:$0xff]
        %v574 = vld [vmem:[%s502 + $0x100] sm:$0xff]
        %v575 = vld [vmem:[%s502 + $0x108] sm:$0xff]
        %v576 = vld [vmem:[%s502 + $0x110] sm:$0xff]
        %v577 = vld [vmem:[%s502 + $0x118] sm:$0xff]
        %v578 = vld [vmem:[%s502 + $0x120] sm:$0xff]
        %v579 = vld [vmem:[%s502 + $0x128] sm:$0xff]
        %v580 = vld [vmem:[%s502 + $0x130] sm:$0xff]
        %v581 = vld [vmem:[%s502 + $0x138] sm:$0xff]
        %v582 = vld [vmem:[%s502 + $0x140] sm:$0xff]
        %v583 = vld [vmem:[%s502 + $0x148] sm:$0xff]
        %v584 = vld [vmem:[%s502 + $0x150] sm:$0xff]
        %v585 = vld [vmem:[%s502 + $0x158] sm:$0xff]
        %v586 = vld [vmem:[%s502 + $0x160] sm:$0xff]
        %v587 = vld [vmem:[%s502 + $0x168] sm:$0xff]
        %v588 = vld [vmem:[%s502 + $0x170] sm:$0xff]
        %v589 = vld [vmem:[%s502 + $0x178] sm:$0xff]
        %v590 = vld [vmem:[%s502 + $0x180] sm:$0xff]
        %v591 = vld [vmem:[%s502 + $0x188] sm:$0xff]
        %v592 = vld [vmem:[%s502 + $0x190] sm:$0xff]
        %v593 = vld [vmem:[%s502 + $0x198] sm:$0xff]
        %v594 = vld [vmem:[%s502 + $0x1a0] sm:$0xff]
        %v595 = vld [vmem:[%s502 + $0x1a8] sm:$0xff]
        %v596 = vld [vmem:[%s502 + $0x1b0] sm:$0xff]
        %v597 = vld [vmem:[%s502 + $0x1b8] sm:$0xff]
        %v598 = vld [vmem:[%s502 + $0x1c0] sm:$0xff]
        %v599 = vld [vmem:[%s502 + $0x1c8] sm:$0xff]
        %v600 = vld [vmem:[%s502 + $0x1d0] sm:$0xff]
        %v601 = vld [vmem:[%s502 + $0x1d8] sm:$0xff]
        %v602 = vld [vmem:[%s502 + $0x1e0] sm:$0xff]
        %v603 = vld [vmem:[%s502 + $0x1e8] sm:$0xff]
        %v604 = vld [vmem:[%s502 + $0x1f0] sm:$0xff]
        %v605 = vld [vmem:[%s502 + $0x1f8] sm:$0xff]
        %v606 = vld [vmem:[%s502 + $0x200] sm:$0xff]
        %v607 = vld [vmem:[%s502 + $0x208] sm:$0xff]
        %v608 = vld [vmem:[%s502 + $0x210] sm:$0xff]
        %v609 = vld [vmem:[%s502 + $0x218] sm:$0xff]
        %v610 = vld [vmem:[%s502 + $0x220] sm:$0xff]
        %v611 = vld [vmem:[%s502 + $0x228] sm:$0xff]
        %v612 = vld [vmem:[%s502 + $0x230] sm:$0xff]
        %v613 = vld [vmem:[%s502 + $0x238] sm:$0xff]
        %v614 = vld [vmem:[%s502 + $0x240] sm:$0xff]
        %v615 = vld [vmem:[%s502 + $0x248] sm:$0xff]
        %v616 = vld [vmem:[%s502 + $0x250] sm:$0xff]
        %v617 = vld [vmem:[%s502 + $0x258] sm:$0xff]
        %v618 = vld [vmem:[%s502 + $0x260] sm:$0xff]
        %v619 = vld [vmem:[%s502 + $0x268] sm:$0xff]
        %v620 = vld [vmem:[%s502 + $0x270] sm:$0xff]
        %v621 = vld [vmem:[%s502 + $0x278] sm:$0xff]
        %v622 = vld [vmem:[%s502 + $0x280] sm:$0xff]
        %v623 = vld [vmem:[%s502 + $0x288] sm:$0xff]
        %v624 = vld [vmem:[%s502 + $0x290] sm:$0xff]
        %v625 = vld [vmem:[%s502 + $0x298] sm:$0xff]
        %v626 = vld [vmem:[%s502 + $0x2a0] sm:$0xff]
        %v627 = vld [vmem:[%s502 + $0x2a8] sm:$0xff]
        %v628 = vld [vmem:[%s502 + $0x2b0] sm:$0xff]
        %v629 = vld [vmem:[%s502 + $0x2b8] sm:$0xff]
        %v630 = vld [vmem:[%s502 + $0x2c0] sm:$0xff]
        %v631 = vld [vmem:[%s502 + $0x2c8] sm:$0xff]
        %v632 = vld [vmem:[%s502 + $0x2d0] sm:$0xff]
        %v633 = vld [vmem:[%s502 + $0x2d8] sm:$0xff]
        %v634 = vld [vmem:[%s502 + $0x2e0] sm:$0xff]
        %v635 = vld [vmem:[%s502 + $0x2e8] sm:$0xff]
        %v636 = vld [vmem:[%s502 + $0x2f0] sm:$0xff]
        %v637 = vld [vmem:[%s502 + $0x2f8] sm:$0xff]
        %v638 = vld [vmem:[%s502 + $0x300] sm:$0xff]
        %v639 = vld [vmem:[%s502 + $0x308] sm:$0xff]
        %v640 = vld [vmem:[%s502 + $0x310] sm:$0xff]
        %v641 = vld [vmem:[%s502 + $0x318] sm:$0xff]
        %v642 = vld [vmem:[%s502 + $0x320] sm:$0xff]
        %v643 = vld [vmem:[%s502 + $0x328] sm:$0xff]
        %v644 = vld [vmem:[%s502 + $0x330] sm:$0xff]
        %v645 = vld [vmem:[%s502 + $0x338] sm:$0xff]
        %v646 = vld [vmem:[%s502 + $0x340] sm:$0xff]
        %v647 = vld [vmem:[%s502 + $0x348] sm:$0xff]
        %v648 = vld [vmem:[%s502 + $0x350] sm:$0xff]
        %v649 = vld [vmem:[%s502 + $0x358] sm:$0xff]
        %v650 = vld [vmem:[%s502 + $0x360] sm:$0xff]
        %v651 = vld [vmem:[%s502 + $0x368] sm:$0xff]
        %v652 = vld [vmem:[%s502 + $0x370] sm:$0xff]
        %v653 = vld [vmem:[%s502 + $0x378] sm:$0xff]
        %v654 = vld [vmem:[%s502 + $0x380] sm:$0xff]
        %v655 = vld [vmem:[%s502 + $0x388] sm:$0xff]
        %v656 = vld [vmem:[%s502 + $0x390] sm:$0xff]
        %v657 = vld [vmem:[%s502 + $0x398] sm:$0xff]
        %v658 = vld [vmem:[%s502 + $0x3a0] sm:$0xff]
        %v659 = vld [vmem:[%s502 + $0x3a8] sm:$0xff]
        %v660 = vld [vmem:[%s502 + $0x3b0] sm:$0xff]
        %v661 = vld [vmem:[%s502 + $0x3b8] sm:$0xff]
        %v662 = vld [vmem:[%s502 + $0x3c0] sm:$0xff]
        %v663 = vld [vmem:[%s502 + $0x3c8] sm:$0xff]
        %v664 = vld [vmem:[%s502 + $0x3d0] sm:$0xff]
        %v665 = vld [vmem:[%s502 + $0x3d8] sm:$0xff]
        %v666 = vld [vmem:[%s502 + $0x3e0] sm:$0xff]
        %v667 = vld [vmem:[%s502 + $0x3e8] sm:$0xff]
        %v668 = vld [vmem:[%s502 + $0x3f0] sm:$0xff]
        %v669 = vld [vmem:[%s502 + $0x3f8] sm:$0xff]
        %v670 = vld [vmem:[%s502 + $0x400] sm:$0xff]
        %v671 = vld [vmem:[%s502 + $0x408] sm:$0xff]
        %v672 = vld [vmem:[%s502 + $0x410] sm:$0xff]
        %v673 = vld [vmem:[%s502 + $0x418] sm:$0xff]
        %v674 = vld [vmem:[%s502 + $0x420] sm:$0xff]
        %v675 = vld [vmem:[%s502 + $0x428] sm:$0xff]
        %v676 = vld [vmem:[%s502 + $0x430] sm:$0xff]
        %v677 = vld [vmem:[%s502 + $0x438] sm:$0xff]
        %v678 = vld [vmem:[%s502 + $0x440] sm:$0xff]
        %v679 = vld [vmem:[%s502 + $0x448] sm:$0xff]
        %v680 = vld [vmem:[%s502 + $0x450] sm:$0xff]
        %v681 = vld [vmem:[%s502 + $0x458] sm:$0xff]
        %v682 = vld [vmem:[%s502 + $0x460] sm:$0xff]
        %v683 = vld [vmem:[%s502 + $0x468] sm:$0xff]
        %v684 = vld [vmem:[%s502 + $0x470] sm:$0xff]
        %v685 = vld [vmem:[%s502 + $0x478] sm:$0xff]
        %v686 = vld [vmem:[%s502 + $0x480] sm:$0xff]
        %v687 = vld [vmem:[%s502 + $0x488] sm:$0xff]
        %v688 = vld [vmem:[%s502 + $0x490] sm:$0xff]
        %v689 = vld [vmem:[%s502 + $0x498] sm:$0xff]
        %v690 = vld [vmem:[%s502 + $0x4a0] sm:$0xff]
        %v691 = vld [vmem:[%s502 + $0x4a8] sm:$0xff]
        %v692 = vld [vmem:[%s502 + $0x4b0] sm:$0xff]
        %v693 = vld [vmem:[%s502 + $0x4b8] sm:$0xff]
        %v694 = vld [vmem:[%s502 + $0x4c0] sm:$0xff]
        %v695 = vld [vmem:[%s502 + $0x4c8] sm:$0xff]
        %v696 = vld [vmem:[%s502 + $0x4d0] sm:$0xff]
        %v697 = vld [vmem:[%s502 + $0x4d8] sm:$0xff]
        %v698 = vld [vmem:[%s502 + $0x4e0] sm:$0xff]
        %v699 = vld [vmem:[%s502 + $0x4e8] sm:$0xff]
        %v700 = vld [vmem:[%s502 + $0x4f0] sm:$0xff]
        %v701 = vld [vmem:[%s502 + $0x4f8] sm:$0xff]
        %v702 = vld [vmem:[%s502 + $0x500] sm:$0xff]
        %v703 = vld [vmem:[%s502 + $0x508] sm:$0xff]
        %v704 = vld [vmem:[%s502 + $0x510] sm:$0xff]
        %v705 = vld [vmem:[%s502 + $0x518] sm:$0xff]
        %v706 = vld [vmem:[%s502 + $0x520] sm:$0xff]
        %v707 = vld [vmem:[%s502 + $0x528] sm:$0xff]
        %v708 = vld [vmem:[%s502 + $0x530] sm:$0xff]
        %v709 = vld [vmem:[%s502 + $0x538] sm:$0xff]
        %v710 = vld [vmem:[%s502 + $0x540] sm:$0xff]
        %v711 = vld [vmem:[%s502 + $0x548] sm:$0xff]
        %v712 = vld [vmem:[%s502 + $0x550] sm:$0xff]
        %v713 = vld [vmem:[%s502 + $0x558] sm:$0xff]
        %v714 = vld [vmem:[%s502 + $0x560] sm:$0xff]
        %v715 = vld [vmem:[%s502 + $0x568] sm:$0xff]
        %v716 = vld [vmem:[%s502 + $0x570] sm:$0xff]
        %v717 = vld [vmem:[%s502 + $0x578] sm:$0xff]
        %v718 = vld [vmem:[%s502 + $0x580] sm:$0xff]
        %v719 = vld [vmem:[%s502 + $0x588] sm:$0xff]
        %v720 = vld [vmem:[%s502 + $0x590] sm:$0xff]
        %v721 = vld [vmem:[%s502 + $0x598] sm:$0xff]
        %v722 = vld [vmem:[%s502 + $0x5a0] sm:$0xff]
        %v723 = vld [vmem:[%s502 + $0x5a8] sm:$0xff]
        %v724 = vld [vmem:[%s502 + $0x5b0] sm:$0xff]
        %v725 = vld [vmem:[%s502 + $0x5b8] sm:$0xff]
        %v726 = vld [vmem:[%s502 + $0x5c0] sm:$0xff]
        %v727 = vld [vmem:[%s502 + $0x5c8] sm:$0xff]
        %v728 = vld [vmem:[%s502 + $0x5d0] sm:$0xff]
        %v729 = vld [vmem:[%s502 + $0x5d8] sm:$0xff]
        %v730 = vld [vmem:[%s502 + $0x5e0] sm:$0xff]
        %v731 = vld [vmem:[%s502 + $0x5e8] sm:$0xff]
        %v732 = vld [vmem:[%s502 + $0x5f0] sm:$0xff]
        %v733 = vld [vmem:[%s502 + $0x5f8] sm:$0xff]
        %v738 = vunpack.c.l.b16 %v538
        %v739 = vunpack.c.h.b16 %v538
        %v740 = vunpack.c.l.b16 %v539
        %v741 = vunpack.c.h.b16 %v539
        %v742 = vunpack.c.l.b16 %v540
        %v743 = vunpack.c.h.b16 %v540
        %v744 = vunpack.c.l.b16 %v541
        %v745 = vunpack.c.h.b16 %v541
        %v746 = vpack.c.b16 %v742, %v738
        %v747 = vpack.c.b16 %v743, %v739
        %v748 = vpack.c.b16 %v744, %v740
        %v749 = vpack.c.b16 %v745, %v741
        %v946 = vunpack.c.l.b16 %v542
        %v947 = vunpack.c.h.b16 %v542
        %v948 = vunpack.c.l.b16 %v543
        %v949 = vunpack.c.h.b16 %v543
        %v950 = vunpack.c.l.b16 %v544
        %v951 = vunpack.c.h.b16 %v544
        %v952 = vunpack.c.l.b16 %v545
        %v953 = vunpack.c.h.b16 %v545
        %v954 = vunpack.c.l.b16 %v546
        %v955 = vunpack.c.h.b16 %v546
        %v956 = vunpack.c.l.b16 %v547
        %v957 = vunpack.c.h.b16 %v547
        %v958 = vunpack.c.l.b16 %v548
        %v959 = vunpack.c.h.b16 %v548
        %v960 = vunpack.c.l.b16 %v549
        %v961 = vunpack.c.h.b16 %v549
        %v962 = vunpack.c.l.b16 %v550
        %v963 = vunpack.c.h.b16 %v550
        %v964 = vunpack.c.l.b16 %v551
        %v965 = vunpack.c.h.b16 %v551
        %v966 = vunpack.c.l.b16 %v552
        %v967 = vunpack.c.h.b16 %v552
        %v968 = vunpack.c.l.b16 %v553
        %v969 = vunpack.c.h.b16 %v553
        %v970 = vunpack.c.l.b16 %v554
        %v971 = vunpack.c.h.b16 %v554
        %v972 = vunpack.c.l.b16 %v555
        %v973 = vunpack.c.h.b16 %v555
        %v974 = vunpack.c.l.b16 %v556
        %v975 = vunpack.c.h.b16 %v556
        %v976 = vunpack.c.l.b16 %v557
        %v977 = vunpack.c.h.b16 %v557
        %v978 = vunpack.c.l.b16 %v558
        %v979 = vunpack.c.h.b16 %v558
        %v980 = vunpack.c.l.b16 %v559
        %v981 = vunpack.c.h.b16 %v559
        %v982 = vunpack.c.l.b16 %v560
        %v983 = vunpack.c.h.b16 %v560
        %v984 = vunpack.c.l.b16 %v561
        %v985 = vunpack.c.h.b16 %v561
        %v986 = vunpack.c.l.b16 %v562
        %v987 = vunpack.c.h.b16 %v562
        %v988 = vunpack.c.l.b16 %v563
        %v989 = vunpack.c.h.b16 %v563
        %v990 = vunpack.c.l.b16 %v564
        %v991 = vunpack.c.h.b16 %v564
        %v992 = vunpack.c.l.b16 %v565
        %v993 = vunpack.c.h.b16 %v565
        %v994 = vunpack.c.l.b16 %v566
        %v995 = vunpack.c.h.b16 %v566
        %v996 = vunpack.c.l.b16 %v567
        %v997 = vunpack.c.h.b16 %v567
        %v998 = vunpack.c.l.b16 %v568
        %v999 = vunpack.c.h.b16 %v568
        %v1000 = vunpack.c.l.b16 %v569
        %v1001 = vunpack.c.h.b16 %v569
        %v1002 = vunpack.c.l.b16 %v570
        %v1003 = vunpack.c.h.b16 %v570
        %v1004 = vunpack.c.l.b16 %v571
        %v1005 = vunpack.c.h.b16 %v571
        %v1006 = vunpack.c.l.b16 %v572
        %v1007 = vunpack.c.h.b16 %v572
        %v1008 = vunpack.c.l.b16 %v573
        %v1009 = vunpack.c.h.b16 %v573
        %v1010 = vunpack.c.l.b16 %v574
        %v1011 = vunpack.c.h.b16 %v574
        %v1012 = vunpack.c.l.b16 %v575
        %v1013 = vunpack.c.h.b16 %v575
        %v1014 = vunpack.c.l.b16 %v576
        %v1015 = vunpack.c.h.b16 %v576
        %v1016 = vunpack.c.l.b16 %v577
        %v1017 = vunpack.c.h.b16 %v577
        %v1018 = vunpack.c.l.b16 %v578
        %v1019 = vunpack.c.h.b16 %v578
        %v1020 = vunpack.c.l.b16 %v579
        %v1021 = vunpack.c.h.b16 %v579
        %v1022 = vunpack.c.l.b16 %v580
        %v1023 = vunpack.c.h.b16 %v580
        %v1024 = vunpack.c.l.b16 %v581
        %v1025 = vunpack.c.h.b16 %v581
        %v1026 = vunpack.c.l.b16 %v582
        %v1027 = vunpack.c.h.b16 %v582
        %v1028 = vunpack.c.l.b16 %v583
        %v1029 = vunpack.c.h.b16 %v583
        %v1030 = vunpack.c.l.b16 %v584
        %v1031 = vunpack.c.h.b16 %v584
        %v1032 = vunpack.c.l.b16 %v585
        %v1033 = vunpack.c.h.b16 %v585
        %v1034 = vunpack.c.l.b16 %v586
        %v1035 = vunpack.c.h.b16 %v586
        %v1036 = vunpack.c.l.b16 %v587
        %v1037 = vunpack.c.h.b16 %v587
        %v1038 = vunpack.c.l.b16 %v588
        %v1039 = vunpack.c.h.b16 %v588
        %v1040 = vunpack.c.l.b16 %v589
        %v1041 = vunpack.c.h.b16 %v589
        %v1042 = vunpack.c.l.b16 %v590
        %v1043 = vunpack.c.h.b16 %v590
        %v1044 = vunpack.c.l.b16 %v591
        %v1045 = vunpack.c.h.b16 %v591
        %v1046 = vunpack.c.l.b16 %v592
        %v1047 = vunpack.c.h.b16 %v592
        %v1048 = vunpack.c.l.b16 %v593
        %v1049 = vunpack.c.h.b16 %v593
        %v1050 = vunpack.c.l.b16 %v594
        %v1051 = vunpack.c.h.b16 %v594
        %v1052 = vunpack.c.l.b16 %v595
        %v1053 = vunpack.c.h.b16 %v595
        %v1054 = vunpack.c.l.b16 %v596
        %v1055 = vunpack.c.h.b16 %v596
        %v1056 = vunpack.c.l.b16 %v597
        %v1057 = vunpack.c.h.b16 %v597
        %v1058 = vunpack.c.l.b16 %v598
        %v1059 = vunpack.c.h.b16 %v598
        %v1060 = vunpack.c.l.b16 %v599
        %v1061 = vunpack.c.h.b16 %v599
        %v1062 = vunpack.c.l.b16 %v600
        %v1063 = vunpack.c.h.b16 %v600
        %v1064 = vunpack.c.l.b16 %v601
        %v1065 = vunpack.c.h.b16 %v601
        %v1066 = vunpack.c.l.b16 %v602
        %v1067 = vunpack.c.h.b16 %v602
        %v1068 = vunpack.c.l.b16 %v603
        %v1069 = vunpack.c.h.b16 %v603
        %v1070 = vunpack.c.l.b16 %v604
        %v1071 = vunpack.c.h.b16 %v604
        %v1072 = vunpack.c.l.b16 %v605
        %v1073 = vunpack.c.h.b16 %v605
        %v1074 = vunpack.c.l.b16 %v606
        %v1075 = vunpack.c.h.b16 %v606
        %v1076 = vunpack.c.l.b16 %v607
        %v1077 = vunpack.c.h.b16 %v607
        %v1078 = vunpack.c.l.b16 %v608
        %v1079 = vunpack.c.h.b16 %v608
        %v1080 = vunpack.c.l.b16 %v609
        %v1081 = vunpack.c.h.b16 %v609
        %v1082 = vunpack.c.l.b16 %v610
        %v1083 = vunpack.c.h.b16 %v610
        %v1084 = vunpack.c.l.b16 %v611
        %v1085 = vunpack.c.h.b16 %v611
        %v1086 = vunpack.c.l.b16 %v612
        %v1087 = vunpack.c.h.b16 %v612
        %v1088 = vunpack.c.l.b16 %v613
        %v1089 = vunpack.c.h.b16 %v613
        %v1090 = vunpack.c.l.b16 %v614
        %v1091 = vunpack.c.h.b16 %v614
        %v1092 = vunpack.c.l.b16 %v615
        %v1093 = vunpack.c.h.b16 %v615
        %v1094 = vunpack.c.l.b16 %v616
        %v1095 = vunpack.c.h.b16 %v616
        %v1096 = vunpack.c.l.b16 %v617
        %v1097 = vunpack.c.h.b16 %v617
        %v1098 = vunpack.c.l.b16 %v618
        %v1099 = vunpack.c.h.b16 %v618
        %v1100 = vunpack.c.l.b16 %v619
        %v1101 = vunpack.c.h.b16 %v619
        %v1102 = vunpack.c.l.b16 %v620
        %v1103 = vunpack.c.h.b16 %v620
        %v1104 = vunpack.c.l.b16 %v621
        %v1105 = vunpack.c.h.b16 %v621
        %v1106 = vunpack.c.l.b16 %v622
        %v1107 = vunpack.c.h.b16 %v622
        %v1108 = vunpack.c.l.b16 %v623
        %v1109 = vunpack.c.h.b16 %v623
        %v1110 = vunpack.c.l.b16 %v624
        %v1111 = vunpack.c.h.b16 %v624
        %v1112 = vunpack.c.l.b16 %v625
        %v1113 = vunpack.c.h.b16 %v625
        %v1114 = vunpack.c.l.b16 %v626
        %v1115 = vunpack.c.h.b16 %v626
        %v1116 = vunpack.c.l.b16 %v627
        %v1117 = vunpack.c.h.b16 %v627
        %v1118 = vunpack.c.l.b16 %v628
        %v1119 = vunpack.c.h.b16 %v628
        %v1120 = vunpack.c.l.b16 %v629
        %v1121 = vunpack.c.h.b16 %v629
        %v1122 = vunpack.c.l.b16 %v630
        %v1123 = vunpack.c.h.b16 %v630
        %v1124 = vunpack.c.l.b16 %v631
        %v1125 = vunpack.c.h.b16 %v631
        %v1126 = vunpack.c.l.b16 %v632
        %v1127 = vunpack.c.h.b16 %v632
        %v1128 = vunpack.c.l.b16 %v633
        %v1129 = vunpack.c.h.b16 %v633
        %v1130 = vunpack.c.l.b16 %v634
        %v1131 = vunpack.c.h.b16 %v634
        %v1132 = vunpack.c.l.b16 %v635
        %v1133 = vunpack.c.h.b16 %v635
        %v1134 = vunpack.c.l.b16 %v636
        %v1135 = vunpack.c.h.b16 %v636
        %v1136 = vunpack.c.l.b16 %v637
        %v1137 = vunpack.c.h.b16 %v637
        %v1138 = vunpack.c.l.b16 %v638
        %v1139 = vunpack.c.h.b16 %v638
        %v1140 = vunpack.c.l.b16 %v639
        %v1141 = vunpack.c.h.b16 %v639
        %v1142 = vunpack.c.l.b16 %v640
        %v1143 = vunpack.c.h.b16 %v640
        %v1144 = vunpack.c.l.b16 %v641
        %v1145 = vunpack.c.h.b16 %v641
        %v1146 = vunpack.c.l.b16 %v642
        %v1147 = vunpack.c.h.b16 %v642
        %v1148 = vunpack.c.l.b16 %v643
        %v1149 = vunpack.c.h.b16 %v643
        %v1150 = vunpack.c.l.b16 %v644
        %v1151 = vunpack.c.h.b16 %v644
        %v1152 = vunpack.c.l.b16 %v645
        %v1153 = vunpack.c.h.b16 %v645
        %v1154 = vunpack.c.l.b16 %v646
        %v1155 = vunpack.c.h.b16 %v646
        %v1156 = vunpack.c.l.b16 %v647
        %v1157 = vunpack.c.h.b16 %v647
        %v1158 = vunpack.c.l.b16 %v648
        %v1159 = vunpack.c.h.b16 %v648
        %v1160 = vunpack.c.l.b16 %v649
        %v1161 = vunpack.c.h.b16 %v649
        %v1162 = vunpack.c.l.b16 %v650
        %v1163 = vunpack.c.h.b16 %v650
        %v1164 = vunpack.c.l.b16 %v651
        %v1165 = vunpack.c.h.b16 %v651
        %v1166 = vunpack.c.l.b16 %v652
        %v1167 = vunpack.c.h.b16 %v652
        %v1168 = vunpack.c.l.b16 %v653
        %v1169 = vunpack.c.h.b16 %v653
        %v1170 = vunpack.c.l.b16 %v654
        %v1171 = vunpack.c.h.b16 %v654
        %v1172 = vunpack.c.l.b16 %v655
        %v1173 = vunpack.c.h.b16 %v655
        %v1174 = vunpack.c.l.b16 %v656
        %v1175 = vunpack.c.h.b16 %v656
        %v1176 = vunpack.c.l.b16 %v657
        %v1177 = vunpack.c.h.b16 %v657
        %v1178 = vunpack.c.l.b16 %v658
        %v1179 = vunpack.c.h.b16 %v658
        %v1180 = vunpack.c.l.b16 %v659
        %v1181 = vunpack.c.h.b16 %v659
        %v1182 = vunpack.c.l.b16 %v660
        %v1183 = vunpack.c.h.b16 %v660
        %v1184 = vunpack.c.l.b16 %v661
        %v1185 = vunpack.c.h.b16 %v661
        %v1186 = vunpack.c.l.b16 %v662
        %v1187 = vunpack.c.h.b16 %v662
        %v1188 = vunpack.c.l.b16 %v663
        %v1189 = vunpack.c.h.b16 %v663
        %v1190 = vunpack.c.l.b16 %v664
        %v1191 = vunpack.c.h.b16 %v664
        %v1192 = vunpack.c.l.b16 %v665
        %v1193 = vunpack.c.h.b16 %v665
        %v1194 = vunpack.c.l.b16 %v666
        %v1195 = vunpack.c.h.b16 %v666
        %v1196 = vunpack.c.l.b16 %v667
        %v1197 = vunpack.c.h.b16 %v667
        %v1198 = vunpack.c.l.b16 %v668
        %v1199 = vunpack.c.h.b16 %v668
        %v1200 = vunpack.c.l.b16 %v669
        %v1201 = vunpack.c.h.b16 %v669
        %v1202 = vunpack.c.l.b16 %v670
        %v1203 = vunpack.c.h.b16 %v670
        %v1204 = vunpack.c.l.b16 %v671
        %v1205 = vunpack.c.h.b16 %v671
        %v1206 = vunpack.c.l.b16 %v672
        %v1207 = vunpack.c.h.b16 %v672
        %v1208 = vunpack.c.l.b16 %v673
        %v1209 = vunpack.c.h.b16 %v673
        %v1210 = vunpack.c.l.b16 %v674
        %v1211 = vunpack.c.h.b16 %v674
        %v1212 = vunpack.c.l.b16 %v675
        %v1213 = vunpack.c.h.b16 %v675
        %v1214 = vunpack.c.l.b16 %v676
        %v1215 = vunpack.c.h.b16 %v676
        %v1216 = vunpack.c.l.b16 %v677
        %v1217 = vunpack.c.h.b16 %v677
        %v1218 = vunpack.c.l.b16 %v678
        %v1219 = vunpack.c.h.b16 %v678
        %v1220 = vunpack.c.l.b16 %v679
        %v1221 = vunpack.c.h.b16 %v679
        %v1222 = vunpack.c.l.b16 %v680
        %v1223 = vunpack.c.h.b16 %v680
        %v1224 = vunpack.c.l.b16 %v681
        %v1225 = vunpack.c.h.b16 %v681
        %v1226 = vunpack.c.l.b16 %v682
        %v1227 = vunpack.c.h.b16 %v682
        %v1228 = vunpack.c.l.b16 %v683
        %v1229 = vunpack.c.h.b16 %v683
        %v1230 = vunpack.c.l.b16 %v684
        %v1231 = vunpack.c.h.b16 %v684
        %v1232 = vunpack.c.l.b16 %v685
        %v1233 = vunpack.c.h.b16 %v685
        %v1234 = vunpack.c.l.b16 %v686
        %v1235 = vunpack.c.h.b16 %v686
        %v1236 = vunpack.c.l.b16 %v687
        %v1237 = vunpack.c.h.b16 %v687
        %v1238 = vunpack.c.l.b16 %v688
        %v1239 = vunpack.c.h.b16 %v688
        %v1240 = vunpack.c.l.b16 %v689
        %v1241 = vunpack.c.h.b16 %v689
        %v1242 = vunpack.c.l.b16 %v690
        %v1243 = vunpack.c.h.b16 %v690
        %v1244 = vunpack.c.l.b16 %v691
        %v1245 = vunpack.c.h.b16 %v691
        %v1246 = vunpack.c.l.b16 %v692
        %v1247 = vunpack.c.h.b16 %v692
        %v1248 = vunpack.c.l.b16 %v693
        %v1249 = vunpack.c.h.b16 %v693
        %v1250 = vunpack.c.l.b16 %v694
        %v1251 = vunpack.c.h.b16 %v694
        %v1252 = vunpack.c.l.b16 %v695
        %v1253 = vunpack.c.h.b16 %v695
        %v1254 = vunpack.c.l.b16 %v696
        %v1255 = vunpack.c.h.b16 %v696
        %v1256 = vunpack.c.l.b16 %v697
        %v1257 = vunpack.c.h.b16 %v697
        %v1258 = vunpack.c.l.b16 %v698
        %v1259 = vunpack.c.h.b16 %v698
        %v1260 = vunpack.c.l.b16 %v699
        %v1261 = vunpack.c.h.b16 %v699
        %v1262 = vunpack.c.l.b16 %v700
        %v1263 = vunpack.c.h.b16 %v700
        %v1264 = vunpack.c.l.b16 %v701
        %v1265 = vunpack.c.h.b16 %v701
        %v1266 = vunpack.c.l.b16 %v702
        %v1267 = vunpack.c.h.b16 %v702
        %v1268 = vunpack.c.l.b16 %v703
        %v1269 = vunpack.c.h.b16 %v703
        %v1270 = vunpack.c.l.b16 %v704
        %v1271 = vunpack.c.h.b16 %v704
        %v1272 = vunpack.c.l.b16 %v705
        %v1273 = vunpack.c.h.b16 %v705
        %v1274 = vunpack.c.l.b16 %v706
        %v1275 = vunpack.c.h.b16 %v706
        %v1276 = vunpack.c.l.b16 %v707
        %v1277 = vunpack.c.h.b16 %v707
        %v1278 = vunpack.c.l.b16 %v708
        %v1279 = vunpack.c.h.b16 %v708
        %v1280 = vunpack.c.l.b16 %v709
        %v1281 = vunpack.c.h.b16 %v709
        %v1282 = vunpack.c.l.b16 %v710
        %v1283 = vunpack.c.h.b16 %v710
        %v1284 = vunpack.c.l.b16 %v711
        %v1285 = vunpack.c.h.b16 %v711
        %v1286 = vunpack.c.l.b16 %v712
        %v1287 = vunpack.c.h.b16 %v712
        %v1288 = vunpack.c.l.b16 %v713
        %v1289 = vunpack.c.h.b16 %v713
        %v1290 = vunpack.c.l.b16 %v714
        %v1291 = vunpack.c.h.b16 %v714
        %v1292 = vunpack.c.l.b16 %v715
        %v1293 = vunpack.c.h.b16 %v715
        %v1294 = vunpack.c.l.b16 %v716
        %v1295 = vunpack.c.h.b16 %v716
        %v1296 = vunpack.c.l.b16 %v717
        %v1297 = vunpack.c.h.b16 %v717
        %v1298 = vunpack.c.l.b16 %v718
        %v1299 = vunpack.c.h.b16 %v718
        %v1300 = vunpack.c.l.b16 %v719
        %v1301 = vunpack.c.h.b16 %v719
        %v1302 = vunpack.c.l.b16 %v720
        %v1303 = vunpack.c.h.b16 %v720
        %v1304 = vunpack.c.l.b16 %v721
        %v1305 = vunpack.c.h.b16 %v721
        %v1306 = vunpack.c.l.b16 %v722
        %v1307 = vunpack.c.h.b16 %v722
        %v1308 = vunpack.c.l.b16 %v723
        %v1309 = vunpack.c.h.b16 %v723
        %v1310 = vunpack.c.l.b16 %v724
        %v1311 = vunpack.c.h.b16 %v724
        %v1312 = vunpack.c.l.b16 %v725
        %v1313 = vunpack.c.h.b16 %v725
        %v1314 = vunpack.c.l.b16 %v726
        %v1315 = vunpack.c.h.b16 %v726
        %v1316 = vunpack.c.l.b16 %v727
        %v1317 = vunpack.c.h.b16 %v727
        %v1318 = vunpack.c.l.b16 %v728
        %v1319 = vunpack.c.h.b16 %v728
        %v1320 = vunpack.c.l.b16 %v729
        %v1321 = vunpack.c.h.b16 %v729
        %v1322 = vunpack.c.l.b16 %v730
        %v1323 = vunpack.c.h.b16 %v730
        %v1324 = vunpack.c.l.b16 %v731
        %v1325 = vunpack.c.h.b16 %v731
        %v1326 = vunpack.c.l.b16 %v732
        %v1327 = vunpack.c.h.b16 %v732
        %v1328 = vunpack.c.l.b16 %v733
        %v1329 = vunpack.c.h.b16 %v733
        %v1330 = vpack.c.b16 %v952, %v946
        %v1331 = vpack.c.b16 %v953, %v947
        %v1332 = vpack.c.b16 %v954, %v948
        %v1333 = vpack.c.b16 %v955, %v949
        %v1334 = vpack.c.b16 %v956, %v950
        %v1335 = vpack.c.b16 %v957, %v951
        %v1336 = vpack.c.b16 %v964, %v958
        %v1337 = vpack.c.b16 %v965, %v959
        %v1338 = vpack.c.b16 %v966, %v960
        %v1339 = vpack.c.b16 %v967, %v961
        %v1340 = vpack.c.b16 %v968, %v962
        %v1341 = vpack.c.b16 %v969, %v963
        %v1342 = vpack.c.b16 %v976, %v970
        %v1343 = vpack.c.b16 %v977, %v971
        %v1344 = vpack.c.b16 %v978, %v972
        %v1345 = vpack.c.b16 %v979, %v973
        %v1346 = vpack.c.b16 %v980, %v974
        %v1347 = vpack.c.b16 %v981, %v975
        %v1348 = vpack.c.b16 %v988, %v982
        %v1349 = vpack.c.b16 %v989, %v983
        %v1350 = vpack.c.b16 %v990, %v984
        %v1351 = vpack.c.b16 %v991, %v985
        %v1352 = vpack.c.b16 %v992, %v986
        %v1353 = vpack.c.b16 %v993, %v987
        %v1354 = vpack.c.b16 %v1000, %v994
        %v1355 = vpack.c.b16 %v1001, %v995
        %v1356 = vpack.c.b16 %v1002, %v996
        %v1357 = vpack.c.b16 %v1003, %v997
        %v1358 = vpack.c.b16 %v1004, %v998
        %v1359 = vpack.c.b16 %v1005, %v999
        %v1360 = vpack.c.b16 %v1012, %v1006
        %v1361 = vpack.c.b16 %v1013, %v1007
        %v1362 = vpack.c.b16 %v1014, %v1008
        %v1363 = vpack.c.b16 %v1015, %v1009
        %v1364 = vpack.c.b16 %v1016, %v1010
        %v1365 = vpack.c.b16 %v1017, %v1011
        %v1366 = vpack.c.b16 %v1024, %v1018
        %v1367 = vpack.c.b16 %v1025, %v1019
        %v1368 = vpack.c.b16 %v1026, %v1020
        %v1369 = vpack.c.b16 %v1027, %v1021
        %v1370 = vpack.c.b16 %v1028, %v1022
        %v1371 = vpack.c.b16 %v1029, %v1023
        %v1372 = vpack.c.b16 %v1036, %v1030
        %v1373 = vpack.c.b16 %v1037, %v1031
        %v1374 = vpack.c.b16 %v1038, %v1032
        %v1375 = vpack.c.b16 %v1039, %v1033
        %v1376 = vpack.c.b16 %v1040, %v1034
        %v1377 = vpack.c.b16 %v1041, %v1035
        %v1378 = vpack.c.b16 %v1048, %v1042
        %v1379 = vpack.c.b16 %v1049, %v1043
        %v1380 = vpack.c.b16 %v1050, %v1044
        %v1381 = vpack.c.b16 %v1051, %v1045
        %v1382 = vpack.c.b16 %v1052, %v1046
        %v1383 = vpack.c.b16 %v1053, %v1047
        %v1384 = vpack.c.b16 %v1060, %v1054
        %v1385 = vpack.c.b16 %v1061, %v1055
        %v1386 = vpack.c.b16 %v1062, %v1056
        %v1387 = vpack.c.b16 %v1063, %v1057
        %v1388 = vpack.c.b16 %v1064, %v1058
        %v1389 = vpack.c.b16 %v1065, %v1059
        %v1390 = vpack.c.b16 %v1072, %v1066
        %v1391 = vpack.c.b16 %v1073, %v1067
        %v1392 = vpack.c.b16 %v1074, %v1068
        %v1393 = vpack.c.b16 %v1075, %v1069
        %v1394 = vpack.c.b16 %v1076, %v1070
        %v1395 = vpack.c.b16 %v1077, %v1071
        %v1396 = vpack.c.b16 %v1084, %v1078
        %v1397 = vpack.c.b16 %v1085, %v1079
        %v1398 = vpack.c.b16 %v1086, %v1080
        %v1399 = vpack.c.b16 %v1087, %v1081
        %v1400 = vpack.c.b16 %v1088, %v1082
        %v1401 = vpack.c.b16 %v1089, %v1083
        %v1402 = vpack.c.b16 %v1096, %v1090
        %v1403 = vpack.c.b16 %v1097, %v1091
        %v1404 = vpack.c.b16 %v1098, %v1092
        %v1405 = vpack.c.b16 %v1099, %v1093
        %v1406 = vpack.c.b16 %v1100, %v1094
        %v1407 = vpack.c.b16 %v1101, %v1095
        %v1408 = vpack.c.b16 %v1108, %v1102
        %v1409 = vpack.c.b16 %v1109, %v1103
        %v1410 = vpack.c.b16 %v1110, %v1104
        %v1411 = vpack.c.b16 %v1111, %v1105
        %v1412 = vpack.c.b16 %v1112, %v1106
        %v1413 = vpack.c.b16 %v1113, %v1107
        %v1414 = vpack.c.b16 %v1120, %v1114
        %v1415 = vpack.c.b16 %v1121, %v1115
        %v1416 = vpack.c.b16 %v1122, %v1116
        %v1417 = vpack.c.b16 %v1123, %v1117
        %v1418 = vpack.c.b16 %v1124, %v1118
        %v1419 = vpack.c.b16 %v1125, %v1119
        %v1420 = vpack.c.b16 %v1132, %v1126
        %v1421 = vpack.c.b16 %v1133, %v1127
        %v1422 = vpack.c.b16 %v1134, %v1128
        %v1423 = vpack.c.b16 %v1135, %v1129
        %v1424 = vpack.c.b16 %v1136, %v1130
        %v1425 = vpack.c.b16 %v1137, %v1131
        %v1426 = vpack.c.b16 %v1144, %v1138
        %v1427 = vpack.c.b16 %v1145, %v1139
        %v1428 = vpack.c.b16 %v1146, %v1140
        %v1429 = vpack.c.b16 %v1147, %v1141
        %v1430 = vpack.c.b16 %v1148, %v1142
        %v1431 = vpack.c.b16 %v1149, %v1143
        %v1432 = vpack.c.b16 %v1156, %v1150
        %v1433 = vpack.c.b16 %v1157, %v1151
        %v1434 = vpack.c.b16 %v1158, %v1152
        %v1435 = vpack.c.b16 %v1159, %v1153
        %v1436 = vpack.c.b16 %v1160, %v1154
        %v1437 = vpack.c.b16 %v1161, %v1155
        %v1438 = vpack.c.b16 %v1168, %v1162
        %v1439 = vpack.c.b16 %v1169, %v1163
        %v1440 = vpack.c.b16 %v1170, %v1164
        %v1441 = vpack.c.b16 %v1171, %v1165
        %v1442 = vpack.c.b16 %v1172, %v1166
        %v1443 = vpack.c.b16 %v1173, %v1167
        %v1444 = vpack.c.b16 %v1180, %v1174
        %v1445 = vpack.c.b16 %v1181, %v1175
        %v1446 = vpack.c.b16 %v1182, %v1176
        %v1447 = vpack.c.b16 %v1183, %v1177
        %v1448 = vpack.c.b16 %v1184, %v1178
        %v1449 = vpack.c.b16 %v1185, %v1179
        %v1450 = vpack.c.b16 %v1192, %v1186
        %v1451 = vpack.c.b16 %v1193, %v1187
        %v1452 = vpack.c.b16 %v1194, %v1188
        %v1453 = vpack.c.b16 %v1195, %v1189
        %v1454 = vpack.c.b16 %v1196, %v1190
        %v1455 = vpack.c.b16 %v1197, %v1191
        %v1456 = vpack.c.b16 %v1204, %v1198
        %v1457 = vpack.c.b16 %v1205, %v1199
        %v1458 = vpack.c.b16 %v1206, %v1200
        %v1459 = vpack.c.b16 %v1207, %v1201
        %v1460 = vpack.c.b16 %v1208, %v1202
        %v1461 = vpack.c.b16 %v1209, %v1203
        %v1462 = vpack.c.b16 %v1216, %v1210
        %v1463 = vpack.c.b16 %v1217, %v1211
        %v1464 = vpack.c.b16 %v1218, %v1212
        %v1465 = vpack.c.b16 %v1219, %v1213
        %v1466 = vpack.c.b16 %v1220, %v1214
        %v1467 = vpack.c.b16 %v1221, %v1215
        %v1468 = vpack.c.b16 %v1228, %v1222
        %v1469 = vpack.c.b16 %v1229, %v1223
        %v1470 = vpack.c.b16 %v1230, %v1224
        %v1471 = vpack.c.b16 %v1231, %v1225
        %v1472 = vpack.c.b16 %v1232, %v1226
        %v1473 = vpack.c.b16 %v1233, %v1227
        %v1474 = vpack.c.b16 %v1240, %v1234
        %v1475 = vpack.c.b16 %v1241, %v1235
        %v1476 = vpack.c.b16 %v1242, %v1236
        %v1477 = vpack.c.b16 %v1243, %v1237
        %v1478 = vpack.c.b16 %v1244, %v1238
        %v1479 = vpack.c.b16 %v1245, %v1239
        %v1480 = vpack.c.b16 %v1252, %v1246
        %v1481 = vpack.c.b16 %v1253, %v1247
        %v1482 = vpack.c.b16 %v1254, %v1248
        %v1483 = vpack.c.b16 %v1255, %v1249
        %v1484 = vpack.c.b16 %v1256, %v1250
        %v1485 = vpack.c.b16 %v1257, %v1251
        %v1486 = vpack.c.b16 %v1264, %v1258
        %v1487 = vpack.c.b16 %v1265, %v1259
        %v1488 = vpack.c.b16 %v1266, %v1260
        %v1489 = vpack.c.b16 %v1267, %v1261
        %v1490 = vpack.c.b16 %v1268, %v1262
        %v1491 = vpack.c.b16 %v1269, %v1263
        %v1492 = vpack.c.b16 %v1276, %v1270
        %v1493 = vpack.c.b16 %v1277, %v1271
        %v1494 = vpack.c.b16 %v1278, %v1272
        %v1495 = vpack.c.b16 %v1279, %v1273
        %v1496 = vpack.c.b16 %v1280, %v1274
        %v1497 = vpack.c.b16 %v1281, %v1275
        %v1498 = vpack.c.b16 %v1288, %v1282
        %v1499 = vpack.c.b16 %v1289, %v1283
        %v1500 = vpack.c.b16 %v1290, %v1284
        %v1501 = vpack.c.b16 %v1291, %v1285
        %v1502 = vpack.c.b16 %v1292, %v1286
        %v1503 = vpack.c.b16 %v1293, %v1287
        %v1504 = vpack.c.b16 %v1300, %v1294
        %v1505 = vpack.c.b16 %v1301, %v1295
        %v1506 = vpack.c.b16 %v1302, %v1296
        %v1507 = vpack.c.b16 %v1303, %v1297
        %v1508 = vpack.c.b16 %v1304, %v1298
        %v1509 = vpack.c.b16 %v1305, %v1299
        %v1510 = vpack.c.b16 %v1312, %v1306
        %v1511 = vpack.c.b16 %v1313, %v1307
        %v1512 = vpack.c.b16 %v1314, %v1308
        %v1513 = vpack.c.b16 %v1315, %v1309
        %v1514 = vpack.c.b16 %v1316, %v1310
        %v1515 = vpack.c.b16 %v1317, %v1311
        %v1516 = vpack.c.b16 %v1324, %v1318
        %v1517 = vpack.c.b16 %v1325, %v1319
        %v1518 = vpack.c.b16 %v1326, %v1320
        %v1519 = vpack.c.b16 %v1327, %v1321
        %v1520 = vpack.c.b16 %v1328, %v1322
        %v1521 = vpack.c.b16 %v1329, %v1323
        %1714 = vmatpush.bf16.msra.mxu0 %v1372
        %1715 = vmatpush.bf16.msra.mxu0 %v1366
        %1716 = vmatpush.bf16.msra.mxu0 %v1360
        %1717 = vmatpush.bf16.msra.mxu0 %v1354
        %1718 = vmatpush.bf16.msra.mxu0 %v1348
        %1719 = vmatpush.bf16.msra.mxu0 %v1342
        %1720 = vmatpush.bf16.msra.mxu0 %v1336
        %1721 = vmatpush.bf16.msra.mxu0 %v1330
        %1722 = vmatmul.bf16.gmra.mxu0 %v746
        %v1723 = vpop.f32.mrf.mxu0
        %v1724 = vadd.f32 0.0, %v1723
        %v1725 = vpop.f32.mrf.mxu0
        %v1726 = vadd.f32 0.0, %v1725
        %1727 = vdwg.mxu0
        %1728 = vmatpush.bf16.msra.mxu0 %v1420
        %1729 = vmatpush.bf16.msra.mxu0 %v1414
        %1730 = vmatpush.bf16.msra.mxu0 %v1408
        %1731 = vmatpush.bf16.msra.mxu0 %v1402
        %1732 = vmatpush.bf16.msra.mxu0 %v1396
        %1733 = vmatpush.bf16.msra.mxu0 %v1390
        %1734 = vmatpush.bf16.msra.mxu0 %v1384
        %1735 = vmatpush.bf16.msra.mxu0 %v1378
        %1736 = vmatmul.bf16.gmra.mxu0 %v747
        %v1737 = vpop.f32.mrf.mxu0
        %v1738 = vadd.f32 %v1724, %v1737
        %v1739 = vpop.f32.mrf.mxu0
        %v1740 = vadd.f32 %v1726, %v1739
        %1741 = vdwg.mxu0
        %1742 = vmatpush.bf16.msra.mxu0 %v1468
        %1743 = vmatpush.bf16.msra.mxu0 %v1462
        %1744 = vmatpush.bf16.msra.mxu0 %v1456
        %1745 = vmatpush.bf16.msra.mxu0 %v1450
        %1746 = vmatpush.bf16.msra.mxu0 %v1444
        %1747 = vmatpush.bf16.msra.mxu0 %v1438
        %1748 = vmatpush.bf16.msra.mxu0 %v1432
        %1749 = vmatpush.bf16.msra.mxu0 %v1426
        %1750 = vmatmul.bf16.gmra.mxu0 %v748
        %v1751 = vpop.f32.mrf.mxu0
        %v1752 = vadd.f32 %v1738, %v1751
        %v1753 = vpop.f32.mrf.mxu0
        %v1754 = vadd.f32 %v1740, %v1753
        %1755 = vdwg.mxu0
        %1756 = vmatpush.bf16.msra.mxu0 %v1516
        %1757 = vmatpush.bf16.msra.mxu0 %v1510
        %1758 = vmatpush.bf16.msra.mxu0 %v1504
        %1759 = vmatpush.bf16.msra.mxu0 %v1498
        %1760 = vmatpush.bf16.msra.mxu0 %v1492
        %1761 = vmatpush.bf16.msra.mxu0 %v1486
        %1762 = vmatpush.bf16.msra.mxu0 %v1480
        %1763 = vmatpush.bf16.msra.mxu0 %v1474
        %1764 = vmatmul.bf16.gmra.mxu0 %v749
        %v1765 = vpop.f32.mrf.mxu0
        %v1766 = vadd.f32 %v1752, %v1765
        %v1767 = vpop.f32.mrf.mxu0
        %v1768 = vadd.f32 %v1754, %v1767
        %1769 = vdwg.mxu0
        %1770 = vmatpush.bf16.msra.mxu0 %v1373
        %1771 = vmatpush.bf16.msra.mxu0 %v1367
        %1772 = vmatpush.bf16.msra.mxu0 %v1361
        %1773 = vmatpush.bf16.msra.mxu0 %v1355
        %1774 = vmatpush.bf16.msra.mxu0 %v1349
        %1775 = vmatpush.bf16.msra.mxu0 %v1343
        %1776 = vmatpush.bf16.msra.mxu0 %v1337
        %1777 = vmatpush.bf16.msra.mxu0 %v1331
        %1778 = vmatmul.bf16.gmra.mxu0 %v746
        %v1779 = vpop.f32.mrf.mxu0
        %v1780 = vadd.f32 0.0, %v1779
        %v1781 = vpop.f32.mrf.mxu0
        %v1782 = vadd.f32 0.0, %v1781
        %1783 = vdwg.mxu0
        %1784 = vmatpush.bf16.msra.mxu0 %v1421
        %1785 = vmatpush.bf16.msra.mxu0 %v1415
        %1786 = vmatpush.bf16.msra.mxu0 %v1409
        %1787 = vmatpush.bf16.msra.mxu0 %v1403
        %1788 = vmatpush.bf16.msra.mxu0 %v1397
        %1789 = vmatpush.bf16.msra.mxu0 %v1391
        %1790 = vmatpush.bf16.msra.mxu0 %v1385
        %1791 = vmatpush.bf16.msra.mxu0 %v1379
        %1792 = vmatmul.bf16.gmra.mxu0 %v747
        %v1793 = vpop.f32.mrf.mxu0
        %v1794 = vadd.f32 %v1780, %v1793
        %v1795 = vpop.f32.mrf.mxu0
        %v1796 = vadd.f32 %v1782, %v1795
        %1797 = vdwg.mxu0
        %1798 = vmatpush.bf16.msra.mxu0 %v1469
        %1799 = vmatpush.bf16.msra.mxu0 %v1463
        %1800 = vmatpush.bf16.msra.mxu0 %v1457
        %1801 = vmatpush.bf16.msra.mxu0 %v1451
        %1802 = vmatpush.bf16.msra.mxu0 %v1445
        %1803 = vmatpush.bf16.msra.mxu0 %v1439
        %1804 = vmatpush.bf16.msra.mxu0 %v1433
        %1805 = vmatpush.bf16.msra.mxu0 %v1427
        %1806 = vmatmul.bf16.gmra.mxu0 %v748
        %v1807 = vpop.f32.mrf.mxu0
        %v1808 = vadd.f32 %v1794, %v1807
        %v1809 = vpop.f32.mrf.mxu0
        %v1810 = vadd.f32 %v1796, %v1809
        %1811 = vdwg.mxu0
        %1812 = vmatpush.bf16.msra.mxu0 %v1517
        %1813 = vmatpush.bf16.msra.mxu0 %v1511
        %1814 = vmatpush.bf16.msra.mxu0 %v1505
        %1815 = vmatpush.bf16.msra.mxu0 %v1499
        %1816 = vmatpush.bf16.msra.mxu0 %v1493
        %1817 = vmatpush.bf16.msra.mxu0 %v1487
        %1818 = vmatpush.bf16.msra.mxu0 %v1481
        %1819 = vmatpush.bf16.msra.mxu0 %v1475
        %1820 = vmatmul.bf16.gmra.mxu0 %v749
        %v1821 = vpop.f32.mrf.mxu0
        %v1822 = vadd.f32 %v1808, %v1821
        %v1823 = vpop.f32.mrf.mxu0
        %v1824 = vadd.f32 %v1810, %v1823
        %1825 = vdwg.mxu0
        %1826 = vmatpush.bf16.msra.mxu0 %v1374
        %1827 = vmatpush.bf16.msra.mxu0 %v1368
        %1828 = vmatpush.bf16.msra.mxu0 %v1362
        %1829 = vmatpush.bf16.msra.mxu0 %v1356
        %1830 = vmatpush.bf16.msra.mxu0 %v1350
        %1831 = vmatpush.bf16.msra.mxu0 %v1344
        %1832 = vmatpush.bf16.msra.mxu0 %v1338
        %1833 = vmatpush.bf16.msra.mxu0 %v1332
        %1834 = vmatmul.bf16.gmra.mxu0 %v746
        %v1835 = vpop.f32.mrf.mxu0
        %v1836 = vadd.f32 0.0, %v1835
        %v1837 = vpop.f32.mrf.mxu0
        %v1838 = vadd.f32 0.0, %v1837
        %1839 = vdwg.mxu0
        %1840 = vmatpush.bf16.msra.mxu0 %v1422
        %1841 = vmatpush.bf16.msra.mxu0 %v1416
        %1842 = vmatpush.bf16.msra.mxu0 %v1410
        %1843 = vmatpush.bf16.msra.mxu0 %v1404
        %1844 = vmatpush.bf16.msra.mxu0 %v1398
        %1845 = vmatpush.bf16.msra.mxu0 %v1392
        %1846 = vmatpush.bf16.msra.mxu0 %v1386
        %1847 = vmatpush.bf16.msra.mxu0 %v1380
        %1848 = vmatmul.bf16.gmra.mxu0 %v747
        %v1849 = vpop.f32.mrf.mxu0
        %v1850 = vadd.f32 %v1836, %v1849
        %v1851 = vpop.f32.mrf.mxu0
        %v1852 = vadd.f32 %v1838, %v1851
        %1853 = vdwg.mxu0
        %1854 = vmatpush.bf16.msra.mxu0 %v1470
        %1855 = vmatpush.bf16.msra.mxu0 %v1464
        %1856 = vmatpush.bf16.msra.mxu0 %v1458
        %1857 = vmatpush.bf16.msra.mxu0 %v1452
        %1858 = vmatpush.bf16.msra.mxu0 %v1446
        %1859 = vmatpush.bf16.msra.mxu0 %v1440
        %1860 = vmatpush.bf16.msra.mxu0 %v1434
        %1861 = vmatpush.bf16.msra.mxu0 %v1428
        %1862 = vmatmul.bf16.gmra.mxu0 %v748
        %v1863 = vpop.f32.mrf.mxu0
        %v1864 = vadd.f32 %v1850, %v1863
        %v1865 = vpop.f32.mrf.mxu0
        %v1866 = vadd.f32 %v1852, %v1865
        %1867 = vdwg.mxu0
        %1868 = vmatpush.bf16.msra.mxu0 %v1518
        %1869 = vmatpush.bf16.msra.mxu0 %v1512
        %1870 = vmatpush.bf16.msra.mxu0 %v1506
        %1871 = vmatpush.bf16.msra.mxu0 %v1500
        %1872 = vmatpush.bf16.msra.mxu0 %v1494
        %1873 = vmatpush.bf16.msra.mxu0 %v1488
        %1874 = vmatpush.bf16.msra.mxu0 %v1482
        %1875 = vmatpush.bf16.msra.mxu0 %v1476
        %1876 = vmatmul.bf16.gmra.mxu0 %v749
        %v1877 = vpop.f32.mrf.mxu0
        %v1878 = vadd.f32 %v1864, %v1877
        %v1879 = vpop.f32.mrf.mxu0
        %v1880 = vadd.f32 %v1866, %v1879
        %1881 = vdwg.mxu0
        %1882 = vmatpush.bf16.msra.mxu0 %v1375
        %1883 = vmatpush.bf16.msra.mxu0 %v1369
        %1884 = vmatpush.bf16.msra.mxu0 %v1363
        %1885 = vmatpush.bf16.msra.mxu0 %v1357
        %1886 = vmatpush.bf16.msra.mxu0 %v1351
        %1887 = vmatpush.bf16.msra.mxu0 %v1345
        %1888 = vmatpush.bf16.msra.mxu0 %v1339
        %1889 = vmatpush.bf16.msra.mxu0 %v1333
        %1890 = vmatmul.bf16.gmra.mxu0 %v746
        %v1891 = vpop.f32.mrf.mxu0
        %v1892 = vadd.f32 0.0, %v1891
        %v1893 = vpop.f32.mrf.mxu0
        %v1894 = vadd.f32 0.0, %v1893
        %1895 = vdwg.mxu0
        %1896 = vmatpush.bf16.msra.mxu0 %v1423
        %1897 = vmatpush.bf16.msra.mxu0 %v1417
        %1898 = vmatpush.bf16.msra.mxu0 %v1411
        %1899 = vmatpush.bf16.msra.mxu0 %v1405
        %1900 = vmatpush.bf16.msra.mxu0 %v1399
        %1901 = vmatpush.bf16.msra.mxu0 %v1393
        %1902 = vmatpush.bf16.msra.mxu0 %v1387
        %1903 = vmatpush.bf16.msra.mxu0 %v1381
        %1904 = vmatmul.bf16.gmra.mxu0 %v747
        %v1905 = vpop.f32.mrf.mxu0
        %v1906 = vadd.f32 %v1892, %v1905
        %v1907 = vpop.f32.mrf.mxu0
        %v1908 = vadd.f32 %v1894, %v1907
        %1909 = vdwg.mxu0
        %1910 = vmatpush.bf16.msra.mxu0 %v1471
        %1911 = vmatpush.bf16.msra.mxu0 %v1465
        %1912 = vmatpush.bf16.msra.mxu0 %v1459
        %1913 = vmatpush.bf16.msra.mxu0 %v1453
        %1914 = vmatpush.bf16.msra.mxu0 %v1447
        %1915 = vmatpush.bf16.msra.mxu0 %v1441
        %1916 = vmatpush.bf16.msra.mxu0 %v1435
        %1917 = vmatpush.bf16.msra.mxu0 %v1429
        %1918 = vmatmul.bf16.gmra.mxu0 %v748
        %v1919 = vpop.f32.mrf.mxu0
        %v1920 = vadd.f32 %v1906, %v1919
        %v1921 = vpop.f32.mrf.mxu0
        %v1922 = vadd.f32 %v1908, %v1921
        %1923 = vdwg.mxu0
        %1924 = vmatpush.bf16.msra.mxu0 %v1519
        %1925 = vmatpush.bf16.msra.mxu0 %v1513
        %1926 = vmatpush.bf16.msra.mxu0 %v1507
        %1927 = vmatpush.bf16.msra.mxu0 %v1501
        %1928 = vmatpush.bf16.msra.mxu0 %v1495
        %1929 = vmatpush.bf16.msra.mxu0 %v1489
        %1930 = vmatpush.bf16.msra.mxu0 %v1483
        %1931 = vmatpush.bf16.msra.mxu0 %v1477
        %1932 = vmatmul.bf16.gmra.mxu0 %v749
        %v1933 = vpop.f32.mrf.mxu0
        %v1934 = vadd.f32 %v1920, %v1933
        %v1935 = vpop.f32.mrf.mxu0
        %v1936 = vadd.f32 %v1922, %v1935
        %1937 = vdwg.mxu0
        %1938 = vmatpush.bf16.msra.mxu0 %v1376
        %1939 = vmatpush.bf16.msra.mxu0 %v1370
        %1940 = vmatpush.bf16.msra.mxu0 %v1364
        %1941 = vmatpush.bf16.msra.mxu0 %v1358
        %1942 = vmatpush.bf16.msra.mxu0 %v1352
        %1943 = vmatpush.bf16.msra.mxu0 %v1346
        %1944 = vmatpush.bf16.msra.mxu0 %v1340
        %1945 = vmatpush.bf16.msra.mxu0 %v1334
        %1946 = vmatmul.bf16.gmra.mxu0 %v746
        %v1947 = vpop.f32.mrf.mxu0
        %v1948 = vadd.f32 0.0, %v1947
        %v1949 = vpop.f32.mrf.mxu0
        %v1950 = vadd.f32 0.0, %v1949
        %1951 = vdwg.mxu0
        %1952 = vmatpush.bf16.msra.mxu0 %v1424
        %1953 = vmatpush.bf16.msra.mxu0 %v1418
        %1954 = vmatpush.bf16.msra.mxu0 %v1412
        %1955 = vmatpush.bf16.msra.mxu0 %v1406
        %1956 = vmatpush.bf16.msra.mxu0 %v1400
        %1957 = vmatpush.bf16.msra.mxu0 %v1394
        %1958 = vmatpush.bf16.msra.mxu0 %v1388
        %1959 = vmatpush.bf16.msra.mxu0 %v1382
        %1960 = vmatmul.bf16.gmra.mxu0 %v747
        %v1961 = vpop.f32.mrf.mxu0
        %v1962 = vadd.f32 %v1948, %v1961
        %v1963 = vpop.f32.mrf.mxu0
        %v1964 = vadd.f32 %v1950, %v1963
        %1965 = vdwg.mxu0
        %1966 = vmatpush.bf16.msra.mxu0 %v1472
        %1967 = vmatpush.bf16.msra.mxu0 %v1466
        %1968 = vmatpush.bf16.msra.mxu0 %v1460
        %1969 = vmatpush.bf16.msra.mxu0 %v1454
        %1970 = vmatpush.bf16.msra.mxu0 %v1448
        %1971 = vmatpush.bf16.msra.mxu0 %v1442
        %1972 = vmatpush.bf16.msra.mxu0 %v1436
        %1973 = vmatpush.bf16.msra.mxu0 %v1430
        %1974 = vmatmul.bf16.gmra.mxu0 %v748
        %v1975 = vpop.f32.mrf.mxu0
        %v1976 = vadd.f32 %v1962, %v1975
        %v1977 = vpop.f32.mrf.mxu0
        %v1978 = vadd.f32 %v1964, %v1977
        %1979 = vdwg.mxu0
        %1980 = vmatpush.bf16.msra.mxu0 %v1520
        %1981 = vmatpush.bf16.msra.mxu0 %v1514
        %1982 = vmatpush.bf16.msra.mxu0 %v1508
        %1983 = vmatpush.bf16.msra.mxu0 %v1502
        %1984 = vmatpush.bf16.msra.mxu0 %v1496
        %1985 = vmatpush.bf16.msra.mxu0 %v1490
        %1986 = vmatpush.bf16.msra.mxu0 %v1484
        %1987 = vmatpush.bf16.msra.mxu0 %v1478
        %1988 = vmatmul.bf16.gmra.mxu0 %v749
        %v1989 = vpop.f32.mrf.mxu0
        %v1990 = vadd.f32 %v1976, %v1989
        %v1991 = vpop.f32.mrf.mxu0
        %v1992 = vadd.f32 %v1978, %v1991
        %1993 = vdwg.mxu0
        %1994 = vmatpush.bf16.msra.mxu0 %v1377
        %1995 = vmatpush.bf16.msra.mxu0 %v1371
        %1996 = vmatpush.bf16.msra.mxu0 %v1365
        %1997 = vmatpush.bf16.msra.mxu0 %v1359
        %1998 = vmatpush.bf16.msra.mxu0 %v1353
        %1999 = vmatpush.bf16.msra.mxu0 %v1347
        %2000 = vmatpush.bf16.msra.mxu0 %v1341
        %2001 = vmatpush.bf16.msra.mxu0 %v1335
        %2002 = vmatmul.bf16.gmra.mxu0 %v746
        %v2003 = vpop.f32.mrf.mxu0
        %v2004 = vadd.f32 0.0, %v2003
        %v2005 = vpop.f32.mrf.mxu0
        %v2006 = vadd.f32 0.0, %v2005
        %2007 = vdwg.mxu0
        %2008 = vmatpush.bf16.msra.mxu0 %v1425
        %2009 = vmatpush.bf16.msra.mxu0 %v1419
        %2010 = vmatpush.bf16.msra.mxu0 %v1413
        %2011 = vmatpush.bf16.msra.mxu0 %v1407
        %2012 = vmatpush.bf16.msra.mxu0 %v1401
        %2013 = vmatpush.bf16.msra.mxu0 %v1395
        %2014 = vmatpush.bf16.msra.mxu0 %v1389
        %2015 = vmatpush.bf16.msra.mxu0 %v1383
        %2016 = vmatmul.bf16.gmra.mxu0 %v747
        %v2017 = vpop.f32.mrf.mxu0
        %v2018 = vadd.f32 %v2004, %v2017
        %v2019 = vpop.f32.mrf.mxu0
        %v2020 = vadd.f32 %v2006, %v2019
        %2021 = vdwg.mxu0
        %2022 = vmatpush.bf16.msra.mxu0 %v1473
        %2023 = vmatpush.bf16.msra.mxu0 %v1467
        %2024 = vmatpush.bf16.msra.mxu0 %v1461
        %2025 = vmatpush.bf16.msra.mxu0 %v1455
        %2026 = vmatpush.bf16.msra.mxu0 %v1449
        %2027 = vmatpush.bf16.msra.mxu0 %v1443
        %2028 = vmatpush.bf16.msra.mxu0 %v1437
        %2029 = vmatpush.bf16.msra.mxu0 %v1431
        %2030 = vmatmul.bf16.gmra.mxu0 %v748
        %v2031 = vpop.f32.mrf.mxu0
        %v2032 = vadd.f32 %v2018, %v2031
        %v2033 = vpop.f32.mrf.mxu0
        %v2034 = vadd.f32 %v2020, %v2033
        %2035 = vdwg.mxu0
        %2036 = vmatpush.bf16.msra.mxu0 %v1521
        %2037 = vmatpush.bf16.msra.mxu0 %v1515
        %2038 = vmatpush.bf16.msra.mxu0 %v1509
        %2039 = vmatpush.bf16.msra.mxu0 %v1503
        %2040 = vmatpush.bf16.msra.mxu0 %v1497
        %2041 = vmatpush.bf16.msra.mxu0 %v1491
        %2042 = vmatpush.bf16.msra.mxu0 %v1485
        %2043 = vmatpush.bf16.msra.mxu0 %v1479
        %2044 = vmatmul.bf16.gmra.mxu0 %v749
        %v2045 = vpop.f32.mrf.mxu0
        %v2046 = vadd.f32 %v2032, %v2045
        %v2047 = vpop.f32.mrf.mxu0
        %v2048 = vadd.f32 %v2034, %v2047
        %2049 = vdwg.mxu0
        %v2050 = vadd.f32 %v526, %v1766
        %v2051 = vadd.f32 %v527, %v1822
        %v2052 = vadd.f32 %v528, %v1878
        %v2053 = vadd.f32 %v529, %v1934
        %v2054 = vadd.f32 %v530, %v1990
        %v2055 = vadd.f32 %v531, %v2046
        %v2056 = vadd.f32 %v532, %v1768
        %v2057 = vadd.f32 %v533, %v1824
        %v2058 = vadd.f32 %v534, %v1880
        %v2059 = vadd.f32 %v535, %v1936
        %v2060 = vadd.f32 %v536, %v1992
        %v2061 = vadd.f32 %v537, %v2048
        %2062 = vst [vmem:[#allocation2] sm:$0xff] %v2050
        %2063 = vst [vmem:[#allocation2 + $0x8] sm:$0xff] %v2051
        %2064 = vst [vmem:[#allocation2 + $0x10] sm:$0xff] %v2052
        %2065 = vst [vmem:[#allocation2 + $0x18] sm:$0xff] %v2053
        %2066 = vst [vmem:[#allocation2 + $0x20] sm:$0xff] %v2054
        %2067 = vst [vmem:[#allocation2 + $0x28] sm:$0xff] %v2055
        %2068 = vst [vmem:[#allocation2 + $0x30] sm:$0xff] %v2056
        %2069 = vst [vmem:[#allocation2 + $0x38] sm:$0xff] %v2057
        %2070 = vst [vmem:[#allocation2 + $0x40] sm:$0xff] %v2058
        %2071 = vst [vmem:[#allocation2 + $0x48] sm:$0xff] %v2059
        %2072 = vst [vmem:[#allocation2 + $0x50] sm:$0xff] %v2060
        %2073 = vst [vmem:[#allocation2 + $0x58] sm:$0xff] %v2061
        %p2074 = scmp.eq.s32.totalorder %s28, 5
        // Predicated region
        $region96: #{custom_bert_forward.1} parent=86 // pred_check
          %p2075 = pneg %p2074
        $region97: #{custom_bert_forward.1} parent=86 // pred_check_branch
          %2077 = sbr.rel (%p2075) target = $region99
        $region98: #{custom_bert_forward.1} parent=86 // pred_region
          %v2078 = vld [vmem:[#allocation2] sm:$0xff]
          %v2079 = vld [vmem:[#allocation2 + $0x8] sm:$0xff]
          %v2080 = vld [vmem:[#allocation2 + $0x10] sm:$0xff]
          %v2081 = vld [vmem:[#allocation2 + $0x18] sm:$0xff]
          %v2082 = vld [vmem:[#allocation2 + $0x20] sm:$0xff]
          %v2083 = vld [vmem:[#allocation2 + $0x28] sm:$0xff]
          %v2084 = vld [vmem:[#allocation2 + $0x30] sm:$0xff]
          %v2085 = vld [vmem:[#allocation2 + $0x38] sm:$0xff]
          %v2086 = vld [vmem:[#allocation2 + $0x40] sm:$0xff]
          %v2087 = vld [vmem:[#allocation2 + $0x48] sm:$0xff]
          %v2088 = vld [vmem:[#allocation2 + $0x50] sm:$0xff]
          %v2089 = vld [vmem:[#allocation2 + $0x58] sm:$0xff]
          %v2090 = vld [vmem:[%s3] sm:$0x3f]
          %v2092 = vperm.slane %v2090, 0
          %v2093 = vperm.slane %v2090, 1
          %v2094 = vperm.slane %v2090, 2
          %v2095 = vperm.slane %v2090, 3
          %v2096 = vperm.slane %v2090, 4
          %v2097 = vperm.slane %v2090, 5
          %v2104 = vadd.f32 %v2078, %v2092
          %v2105 = vadd.f32 %v2079, %v2093
          %v2106 = vadd.f32 %v2080, %v2094
          %v2107 = vadd.f32 %v2081, %v2095
          %v2108 = vadd.f32 %v2082, %v2096
          %v2109 = vadd.f32 %v2083, %v2097
          %v2110 = vadd.f32 %v2084, %v2092
          %v2111 = vadd.f32 %v2085, %v2093
          %v2112 = vadd.f32 %v2086, %v2094
          %v2113 = vadd.f32 %v2087, %v2095
          %v2114 = vadd.f32 %v2088, %v2096
          %v2115 = vadd.f32 %v2089, %v2097
          %v2116 = vld [vmem:[%s495] sm:$0xff]
          %v2117 = vld [vmem:[%s495 + $0x8] sm:$0xff]
          %v2118 = vld [vmem:[%s495 + $0x10] sm:$0xff]
          %v2119 = vld [vmem:[%s495 + $0x18] sm:$0xff]
          %v2120 = vld [vmem:[%s495 + $0x20] sm:$0xff]
          %v2121 = vld [vmem:[%s495 + $0x28] sm:$0xff]
          %v2122 = vunpack.c.l.bf16 %v2116
          %v2123 = vunpack.c.h.bf16 %v2116
          %v2124 = vunpack.c.l.bf16 %v2117
          %v2125 = vunpack.c.h.bf16 %v2117
          %v2126 = vunpack.c.l.bf16 %v2118
          %v2127 = vunpack.c.h.bf16 %v2118
          %v2128 = vunpack.c.l.bf16 %v2119
          %v2129 = vunpack.c.h.bf16 %v2119
          %v2130 = vunpack.c.l.bf16 %v2120
          %v2131 = vunpack.c.h.bf16 %v2120
          %v2132 = vunpack.c.l.bf16 %v2121
          %v2133 = vunpack.c.h.bf16 %v2121
          %v2134 = vadd.f32 %v2104, %v2122
          %v2135 = vadd.f32 %v2105, %v2123
          %v2136 = vadd.f32 %v2106, %v2124
          %v2137 = vadd.f32 %v2107, %v2125
          %v2138 = vadd.f32 %v2108, %v2126
          %v2139 = vadd.f32 %v2109, %v2127
          %v2140 = vadd.f32 %v2110, %v2128
          %v2141 = vadd.f32 %v2111, %v2129
          %v2142 = vadd.f32 %v2112, %v2130
          %v2143 = vadd.f32 %v2113, %v2131
          %v2144 = vadd.f32 %v2114, %v2132
          %v2145 = vadd.f32 %v2115, %v2133
          %v2146 = vadd.f32 %v2134, %v2135
          %v2147 = vadd.f32 %v2146, %v2136
          %v2148 = vadd.f32 %v2147, %v2137
          %v2149 = vadd.f32 %v2148, %v2138
          %v2150 = vadd.f32 %v2149, %v2139
          %2151 = vadd.xlane.f32.xlu0 %v2150
          %v2152 = vpop.xlane.xlu0 %2151
          %v2153 = vadd.f32 %v2140, %v2141
          %v2154 = vadd.f32 %v2153, %v2142
          %v2155 = vadd.f32 %v2154, %v2143
          %v2156 = vadd.f32 %v2155, %v2144
          %v2157 = vadd.f32 %v2156, %v2145
          %2158 = vadd.xlane.f32.xlu0 %v2157
          %v2159 = vpop.xlane.xlu0 %2158
          %v2160 = vrcp.pop 768.0
          %v2161 = vmul.f32 768.0, %v2160
          %v2162 = vsub.f32 1.0, %v2161
          %v2163 = vmul.f32 %v2160, %v2162
          %v2164 = vadd.f32 %v2160, %v2163
          %vm2165 = vweird.f32 %v2160
          %v2166 = vsel %vm2165, %v2160, %v2164
          %v2167 = vmul.f32 %v2152, %v2166
          %v2168 = vmul.f32 %v2159, %v2166
          %v2169 = vsub.f32 %v2134, %v2167
          %v2170 = vsub.f32 %v2135, %v2167
          %v2171 = vsub.f32 %v2136, %v2167
          %v2172 = vsub.f32 %v2137, %v2167
          %v2173 = vsub.f32 %v2138, %v2167
          %v2174 = vsub.f32 %v2139, %v2167
          %v2175 = vsub.f32 %v2140, %v2168
          %v2176 = vsub.f32 %v2141, %v2168
          %v2177 = vsub.f32 %v2142, %v2168
          %v2178 = vsub.f32 %v2143, %v2168
          %v2179 = vsub.f32 %v2144, %v2168
          %v2180 = vsub.f32 %v2145, %v2168
          %v2181 = vmul.f32 %v2169, %v2169
          %v2182 = vmul.f32 %v2170, %v2170
          %v2183 = vmul.f32 %v2171, %v2171
          %v2184 = vmul.f32 %v2172, %v2172
          %v2185 = vmul.f32 %v2173, %v2173
          %v2186 = vmul.f32 %v2174, %v2174
          %v2187 = vmul.f32 %v2175, %v2175
          %v2188 = vmul.f32 %v2176, %v2176
          %v2189 = vmul.f32 %v2177, %v2177
          %v2190 = vmul.f32 %v2178, %v2178
          %v2191 = vmul.f32 %v2179, %v2179
          %v2192 = vmul.f32 %v2180, %v2180
          %v2193 = vadd.f32 %v2181, %v2182
          %v2194 = vadd.f32 %v2193, %v2183
          %v2195 = vadd.f32 %v2194, %v2184
          %v2196 = vadd.f32 %v2195, %v2185
          %v2197 = vadd.f32 %v2196, %v2186
          %2198 = vadd.xlane.f32.xlu0 %v2197
          %v2199 = vpop.xlane.xlu0 %2198
          %v2200 = vadd.f32 %v2187, %v2188
          %v2201 = vadd.f32 %v2200, %v2189
          %v2202 = vadd.f32 %v2201, %v2190
          %v2203 = vadd.f32 %v2202, %v2191
          %v2204 = vadd.f32 %v2203, %v2192
          %2205 = vadd.xlane.f32.xlu0 %v2204
          %v2206 = vpop.xlane.xlu0 %2205
          %v2207 = vmul.f32 %v2199, %v2166
          %v2208 = vmul.f32 %v2206, %v2166
          %v2209 = vadd.f32 %v2207, 1e-12
          %v2210 = vadd.f32 %v2208, 1e-12
          %v2211 = vrsqrt.pop %v2209
          %v2212 = vmul.f32 %v2211, %v2209
          %v2213 = vmul.f32 %v2212, %v2211
          %v2214 = vmul.f32 0.5, %v2213
          %v2215 = vsub.f32 1.5, %v2214
          %v2216 = vmul.f32 %v2211, %v2215
          %vm2217 = vweird.f32 %v2209
          %vm2218 = vweird.f32 %v2211
          %vm2219 = vmor %vm2217, %vm2218
          %v2220 = vsel %vm2219, %v2211, %v2216
          %v2221 = vrsqrt.pop %v2210
          %v2222 = vmul.f32 %v2221, %v2210
          %v2223 = vmul.f32 %v2222, %v2221
          %v2224 = vmul.f32 0.5, %v2223
          %v2225 = vsub.f32 1.5, %v2224
          %v2226 = vmul.f32 %v2221, %v2225
          %vm2227 = vweird.f32 %v2210
          %vm2228 = vweird.f32 %v2221
          %vm2229 = vmor %vm2227, %vm2228
          %v2230 = vsel %vm2229, %v2221, %v2226
          %v2231 = vmul.f32 %v2169, %v2220
          %v2232 = vmul.f32 %v2170, %v2220
          %v2233 = vmul.f32 %v2171, %v2220
          %v2234 = vmul.f32 %v2172, %v2220
          %v2235 = vmul.f32 %v2173, %v2220
          %v2236 = vmul.f32 %v2174, %v2220
          %v2237 = vmul.f32 %v2175, %v2230
          %v2238 = vmul.f32 %v2176, %v2230
          %v2239 = vmul.f32 %v2177, %v2230
          %v2240 = vmul.f32 %v2178, %v2230
          %v2241 = vmul.f32 %v2179, %v2230
          %v2242 = vmul.f32 %v2180, %v2230
          %v2243 = vld [vmem:[%s4] sm:$0x3f]
          %v2245 = vperm.slane %v2243, 0
          %v2246 = vperm.slane %v2243, 1
          %v2247 = vperm.slane %v2243, 2
          %v2248 = vperm.slane %v2243, 3
          %v2249 = vperm.slane %v2243, 4
          %v2250 = vperm.slane %v2243, 5
          %v2257 = vmul.f32 %v2231, %v2245
          %v2258 = vmul.f32 %v2232, %v2246
          %v2259 = vmul.f32 %v2233, %v2247
          %v2260 = vmul.f32 %v2234, %v2248
          %v2261 = vmul.f32 %v2235, %v2249
          %v2262 = vmul.f32 %v2236, %v2250
          %v2263 = vmul.f32 %v2237, %v2245
          %v2264 = vmul.f32 %v2238, %v2246
          %v2265 = vmul.f32 %v2239, %v2247
          %v2266 = vmul.f32 %v2240, %v2248
          %v2267 = vmul.f32 %v2241, %v2249
          %v2268 = vmul.f32 %v2242, %v2250
          %v2269 = vld [vmem:[%s5] sm:$0x3f]
          %v2271 = vperm.slane %v2269, 0
          %v2272 = vperm.slane %v2269, 1
          %v2273 = vperm.slane %v2269, 2
          %v2274 = vperm.slane %v2269, 3
          %v2275 = vperm.slane %v2269, 4
          %v2276 = vperm.slane %v2269, 5
          %v2283 = vadd.f32 %v2257, %v2271
          %v2284 = vadd.f32 %v2258, %v2272
          %v2285 = vadd.f32 %v2259, %v2273
          %v2286 = vadd.f32 %v2260, %v2274
          %v2287 = vadd.f32 %v2261, %v2275
          %v2288 = vadd.f32 %v2262, %v2276
          %v2289 = vadd.f32 %v2263, %v2271
          %v2290 = vadd.f32 %v2264, %v2272
          %v2291 = vadd.f32 %v2265, %v2273
          %v2292 = vadd.f32 %v2266, %v2274
          %v2293 = vadd.f32 %v2267, %v2275
          %v2294 = vadd.f32 %v2268, %v2276
          %v2295 = vpack.c.bf16 %v2289, %v2283
          %v2296 = vpack.c.bf16 %v2290, %v2284
          %v2297 = vpack.c.bf16 %v2291, %v2285
          %v2298 = vpack.c.bf16 %v2292, %v2286
          %v2299 = vpack.c.bf16 %v2293, %v2287
          %v2300 = vpack.c.bf16 %v2294, %v2288
          %v2301 = vld [vmem:[%s6] sm:$0xf]
          %v2302 = vld [vmem:[%s6 + $0x4] sm:$0xf]
          %v2303 = vld [vmem:[%s6 + $0x8] sm:$0xf]
          %v2304 = vld [vmem:[%s6 + $0xc] sm:$0xf]
          %v2305 = vld [vmem:[%s6 + $0x10] sm:$0xf]
          %v2306 = vld [vmem:[%s6 + $0x14] sm:$0xf]
          %v2307 = vld [vmem:[%s6 + $0x18] sm:$0xf]
          %v2308 = vld [vmem:[%s6 + $0x1c] sm:$0xf]
          %v2309 = vld [vmem:[%s6 + $0x20] sm:$0xf]
          %v2310 = vld [vmem:[%s6 + $0x24] sm:$0xf]
          %v2311 = vld [vmem:[%s6 + $0x28] sm:$0xf]
          %v2312 = vld [vmem:[%s6 + $0x2c] sm:$0xf]
          %v2313 = vld [vmem:[%s6 + $0x30] sm:$0xf]
          %v2314 = vld [vmem:[%s6 + $0x34] sm:$0xf]
          %v2315 = vld [vmem:[%s6 + $0x38] sm:$0xf]
          %v2316 = vld [vmem:[%s6 + $0x3c] sm:$0xf]
          %v2317 = vld [vmem:[%s6 + $0x40] sm:$0xf]
          %v2318 = vld [vmem:[%s6 + $0x44] sm:$0xf]
          %v2319 = vld [vmem:[%s6 + $0x48] sm:$0xf]
          %v2320 = vld [vmem:[%s6 + $0x4c] sm:$0xf]
          %v2321 = vld [vmem:[%s6 + $0x50] sm:$0xf]
          %v2322 = vld [vmem:[%s6 + $0x54] sm:$0xf]
          %v2323 = vld [vmem:[%s6 + $0x58] sm:$0xf]
          %v2324 = vld [vmem:[%s6 + $0x5c] sm:$0xf]
          %v2325 = vld [vmem:[%s6 + $0x60] sm:$0xf]
          %v2326 = vld [vmem:[%s6 + $0x64] sm:$0xf]
          %v2327 = vld [vmem:[%s6 + $0x68] sm:$0xf]
          %v2328 = vld [vmem:[%s6 + $0x6c] sm:$0xf]
          %v2329 = vld [vmem:[%s6 + $0x70] sm:$0xf]
          %v2330 = vld [vmem:[%s6 + $0x74] sm:$0xf]
          %v2331 = vld [vmem:[%s6 + $0x78] sm:$0xf]
          %v2332 = vld [vmem:[%s6 + $0x7c] sm:$0xf]
          %v2333 = vld [vmem:[%s6 + $0x80] sm:$0xf]
          %v2334 = vld [vmem:[%s6 + $0x84] sm:$0xf]
          %v2335 = vld [vmem:[%s6 + $0x88] sm:$0xf]
          %v2336 = vld [vmem:[%s6 + $0x8c] sm:$0xf]
          %v2337 = vld [vmem:[%s6 + $0x90] sm:$0xf]
          %v2338 = vld [vmem:[%s6 + $0x94] sm:$0xf]
          %v2339 = vld [vmem:[%s6 + $0x98] sm:$0xf]
          %v2340 = vld [vmem:[%s6 + $0x9c] sm:$0xf]
          %v2341 = vld [vmem:[%s6 + $0xa0] sm:$0xf]
          %v2342 = vld [vmem:[%s6 + $0xa4] sm:$0xf]
          %v2343 = vld [vmem:[%s6 + $0xa8] sm:$0xf]
          %v2344 = vld [vmem:[%s6 + $0xac] sm:$0xf]
          %v2345 = vld [vmem:[%s6 + $0xb0] sm:$0xf]
          %v2346 = vld [vmem:[%s6 + $0xb4] sm:$0xf]
          %v2347 = vld [vmem:[%s6 + $0xb8] sm:$0xf]
          %v2348 = vld [vmem:[%s6 + $0xbc] sm:$0xf]
          %v2349 = vld [vmem:[%s6 + $0xc0] sm:$0xf]
          %v2350 = vld [vmem:[%s6 + $0xc4] sm:$0xf]
          %v2351 = vld [vmem:[%s6 + $0xc8] sm:$0xf]
          %v2352 = vld [vmem:[%s6 + $0xcc] sm:$0xf]
          %v2353 = vld [vmem:[%s6 + $0xd0] sm:$0xf]
          %v2354 = vld [vmem:[%s6 + $0xd4] sm:$0xf]
          %v2355 = vld [vmem:[%s6 + $0xd8] sm:$0xf]
          %v2356 = vld [vmem:[%s6 + $0xdc] sm:$0xf]
          %v2357 = vld [vmem:[%s6 + $0xe0] sm:$0xf]
          %v2358 = vld [vmem:[%s6 + $0xe4] sm:$0xf]
          %v2359 = vld [vmem:[%s6 + $0xe8] sm:$0xf]
          %v2360 = vld [vmem:[%s6 + $0xec] sm:$0xf]
          %v2361 = vld [vmem:[%s6 + $0xf0] sm:$0xf]
          %v2362 = vld [vmem:[%s6 + $0xf4] sm:$0xf]
          %v2363 = vld [vmem:[%s6 + $0xf8] sm:$0xf]
          %v2364 = vld [vmem:[%s6 + $0xfc] sm:$0xf]
          %v2365 = vld [vmem:[%s6 + $0x100] sm:$0xf]
          %v2366 = vld [vmem:[%s6 + $0x104] sm:$0xf]
          %v2367 = vld [vmem:[%s6 + $0x108] sm:$0xf]
          %v2368 = vld [vmem:[%s6 + $0x10c] sm:$0xf]
          %v2369 = vld [vmem:[%s6 + $0x110] sm:$0xf]
          %v2370 = vld [vmem:[%s6 + $0x114] sm:$0xf]
          %v2371 = vld [vmem:[%s6 + $0x118] sm:$0xf]
          %v2372 = vld [vmem:[%s6 + $0x11c] sm:$0xf]
          %v2373 = vld [vmem:[%s6 + $0x120] sm:$0xf]
          %v2374 = vld [vmem:[%s6 + $0x124] sm:$0xf]
          %v2375 = vld [vmem:[%s6 + $0x128] sm:$0xf]
          %v2376 = vld [vmem:[%s6 + $0x12c] sm:$0xf]
          %v2377 = vld [vmem:[%s6 + $0x130] sm:$0xf]
          %v2378 = vld [vmem:[%s6 + $0x134] sm:$0xf]
          %v2379 = vld [vmem:[%s6 + $0x138] sm:$0xf]
          %v2380 = vld [vmem:[%s6 + $0x13c] sm:$0xf]
          %v2381 = vld [vmem:[%s6 + $0x140] sm:$0xf]
          %v2382 = vld [vmem:[%s6 + $0x144] sm:$0xf]
          %v2383 = vld [vmem:[%s6 + $0x148] sm:$0xf]
          %v2384 = vld [vmem:[%s6 + $0x14c] sm:$0xf]
          %v2385 = vld [vmem:[%s6 + $0x150] sm:$0xf]
          %v2386 = vld [vmem:[%s6 + $0x154] sm:$0xf]
          %v2387 = vld [vmem:[%s6 + $0x158] sm:$0xf]
          %v2388 = vld [vmem:[%s6 + $0x15c] sm:$0xf]
          %v2389 = vld [vmem:[%s6 + $0x160] sm:$0xf]
          %v2390 = vld [vmem:[%s6 + $0x164] sm:$0xf]
          %v2391 = vld [vmem:[%s6 + $0x168] sm:$0xf]
          %v2392 = vld [vmem:[%s6 + $0x16c] sm:$0xf]
          %v2393 = vld [vmem:[%s6 + $0x170] sm:$0xf]
          %v2394 = vld [vmem:[%s6 + $0x174] sm:$0xf]
          %v2395 = vld [vmem:[%s6 + $0x178] sm:$0xf]
          %v2396 = vld [vmem:[%s6 + $0x17c] sm:$0xf]
          %v2397 = vld [vmem:[%s7] sm:$0x1]
          %v2399 = vperm.slane %v2397, 0
          %v2497 = vunpack.c.l.b16 %v2301
          %v2498 = vunpack.c.l.b16 %v2302
          %v2499 = vunpack.c.l.b16 %v2303
          %v2500 = vunpack.c.l.b16 %v2304
          %v2501 = vunpack.c.l.b16 %v2305
          %v2502 = vunpack.c.l.b16 %v2306
          %v2503 = vunpack.c.l.b16 %v2307
          %v2504 = vunpack.c.l.b16 %v2308
          %v2505 = vunpack.c.l.b16 %v2309
          %v2506 = vunpack.c.l.b16 %v2310
          %v2507 = vunpack.c.l.b16 %v2311
          %v2508 = vunpack.c.l.b16 %v2312
          %v2509 = vunpack.c.l.b16 %v2313
          %v2510 = vunpack.c.l.b16 %v2314
          %v2511 = vunpack.c.l.b16 %v2315
          %v2512 = vunpack.c.l.b16 %v2316
          %v2513 = vunpack.c.l.b16 %v2317
          %v2514 = vunpack.c.l.b16 %v2318
          %v2515 = vunpack.c.l.b16 %v2319
          %v2516 = vunpack.c.l.b16 %v2320
          %v2517 = vunpack.c.l.b16 %v2321
          %v2518 = vunpack.c.l.b16 %v2322
          %v2519 = vunpack.c.l.b16 %v2323
          %v2520 = vunpack.c.l.b16 %v2324
          %v2521 = vunpack.c.l.b16 %v2325
          %v2522 = vunpack.c.l.b16 %v2326
          %v2523 = vunpack.c.l.b16 %v2327
          %v2524 = vunpack.c.l.b16 %v2328
          %v2525 = vunpack.c.l.b16 %v2329
          %v2526 = vunpack.c.l.b16 %v2330
          %v2527 = vunpack.c.l.b16 %v2331
          %v2528 = vunpack.c.l.b16 %v2332
          %v2529 = vunpack.c.l.b16 %v2333
          %v2530 = vunpack.c.l.b16 %v2334
          %v2531 = vunpack.c.l.b16 %v2335
          %v2532 = vunpack.c.l.b16 %v2336
          %v2533 = vunpack.c.l.b16 %v2337
          %v2534 = vunpack.c.l.b16 %v2338
          %v2535 = vunpack.c.l.b16 %v2339
          %v2536 = vunpack.c.l.b16 %v2340
          %v2537 = vunpack.c.l.b16 %v2341
          %v2538 = vunpack.c.l.b16 %v2342
          %v2539 = vunpack.c.l.b16 %v2343
          %v2540 = vunpack.c.l.b16 %v2344
          %v2541 = vunpack.c.l.b16 %v2345
          %v2542 = vunpack.c.l.b16 %v2346
          %v2543 = vunpack.c.l.b16 %v2347
          %v2544 = vunpack.c.l.b16 %v2348
          %v2545 = vunpack.c.l.b16 %v2349
          %v2546 = vunpack.c.l.b16 %v2350
          %v2547 = vunpack.c.l.b16 %v2351
          %v2548 = vunpack.c.l.b16 %v2352
          %v2549 = vunpack.c.l.b16 %v2353
          %v2550 = vunpack.c.l.b16 %v2354
          %v2551 = vunpack.c.l.b16 %v2355
          %v2552 = vunpack.c.l.b16 %v2356
          %v2553 = vunpack.c.l.b16 %v2357
          %v2554 = vunpack.c.l.b16 %v2358
          %v2555 = vunpack.c.l.b16 %v2359
          %v2556 = vunpack.c.l.b16 %v2360
          %v2557 = vunpack.c.l.b16 %v2361
          %v2558 = vunpack.c.l.b16 %v2362
          %v2559 = vunpack.c.l.b16 %v2363
          %v2560 = vunpack.c.l.b16 %v2364
          %v2561 = vunpack.c.l.b16 %v2365
          %v2562 = vunpack.c.l.b16 %v2366
          %v2563 = vunpack.c.l.b16 %v2367
          %v2564 = vunpack.c.l.b16 %v2368
          %v2565 = vunpack.c.l.b16 %v2369
          %v2566 = vunpack.c.l.b16 %v2370
          %v2567 = vunpack.c.l.b16 %v2371
          %v2568 = vunpack.c.l.b16 %v2372
          %v2569 = vunpack.c.l.b16 %v2373
          %v2570 = vunpack.c.l.b16 %v2374
          %v2571 = vunpack.c.l.b16 %v2375
          %v2572 = vunpack.c.l.b16 %v2376
          %v2573 = vunpack.c.l.b16 %v2377
          %v2574 = vunpack.c.l.b16 %v2378
          %v2575 = vunpack.c.l.b16 %v2379
          %v2576 = vunpack.c.l.b16 %v2380
          %v2577 = vunpack.c.l.b16 %v2381
          %v2578 = vunpack.c.l.b16 %v2382
          %v2579 = vunpack.c.l.b16 %v2383
          %v2580 = vunpack.c.l.b16 %v2384
          %v2581 = vunpack.c.l.b16 %v2385
          %v2582 = vunpack.c.l.b16 %v2386
          %v2583 = vunpack.c.l.b16 %v2387
          %v2584 = vunpack.c.l.b16 %v2388
          %v2585 = vunpack.c.l.b16 %v2389
          %v2586 = vunpack.c.l.b16 %v2390
          %v2587 = vunpack.c.l.b16 %v2391
          %v2588 = vunpack.c.l.b16 %v2392
          %v2589 = vunpack.c.l.b16 %v2393
          %v2590 = vunpack.c.l.b16 %v2394
          %v2591 = vunpack.c.l.b16 %v2395
          %v2592 = vunpack.c.l.b16 %v2396
          %v2593 = vpack.c.b16 %v2498, %v2497
          %v2594 = vpack.c.b16 %v2500, %v2499
          %v2595 = vpack.c.b16 %v2502, %v2501
          %v2596 = vpack.c.b16 %v2504, %v2503
          %v2597 = vpack.c.b16 %v2506, %v2505
          %v2598 = vpack.c.b16 %v2508, %v2507
          %v2599 = vpack.c.b16 %v2510, %v2509
          %v2600 = vpack.c.b16 %v2512, %v2511
          %v2601 = vpack.c.b16 %v2514, %v2513
          %v2602 = vpack.c.b16 %v2516, %v2515
          %v2603 = vpack.c.b16 %v2518, %v2517
          %v2604 = vpack.c.b16 %v2520, %v2519
          %v2605 = vpack.c.b16 %v2522, %v2521
          %v2606 = vpack.c.b16 %v2524, %v2523
          %v2607 = vpack.c.b16 %v2526, %v2525
          %v2608 = vpack.c.b16 %v2528, %v2527
          %v2609 = vpack.c.b16 %v2530, %v2529
          %v2610 = vpack.c.b16 %v2532, %v2531
          %v2611 = vpack.c.b16 %v2534, %v2533
          %v2612 = vpack.c.b16 %v2536, %v2535
          %v2613 = vpack.c.b16 %v2538, %v2537
          %v2614 = vpack.c.b16 %v2540, %v2539
          %v2615 = vpack.c.b16 %v2542, %v2541
          %v2616 = vpack.c.b16 %v2544, %v2543
          %v2617 = vpack.c.b16 %v2546, %v2545
          %v2618 = vpack.c.b16 %v2548, %v2547
          %v2619 = vpack.c.b16 %v2550, %v2549
          %v2620 = vpack.c.b16 %v2552, %v2551
          %v2621 = vpack.c.b16 %v2554, %v2553
          %v2622 = vpack.c.b16 %v2556, %v2555
          %v2623 = vpack.c.b16 %v2558, %v2557
          %v2624 = vpack.c.b16 %v2560, %v2559
          %v2625 = vpack.c.b16 %v2562, %v2561
          %v2626 = vpack.c.b16 %v2564, %v2563
          %v2627 = vpack.c.b16 %v2566, %v2565
          %v2628 = vpack.c.b16 %v2568, %v2567
          %v2629 = vpack.c.b16 %v2570, %v2569
          %v2630 = vpack.c.b16 %v2572, %v2571
          %v2631 = vpack.c.b16 %v2574, %v2573
          %v2632 = vpack.c.b16 %v2576, %v2575
          %v2633 = vpack.c.b16 %v2578, %v2577
          %v2634 = vpack.c.b16 %v2580, %v2579
          %v2635 = vpack.c.b16 %v2582, %v2581
          %v2636 = vpack.c.b16 %v2584, %v2583
          %v2637 = vpack.c.b16 %v2586, %v2585
          %v2638 = vpack.c.b16 %v2588, %v2587
          %v2639 = vpack.c.b16 %v2590, %v2589
          %v2640 = vpack.c.b16 %v2592, %v2591
          %2689 = vmatpush.bf16.msra.mxu0 %v2600
          %2690 = vmatpush.bf16.msra.mxu0 %v2599
          %2691 = vmatpush.bf16.msra.mxu0 %v2598
          %2692 = vmatpush.bf16.msra.mxu0 %v2597
          %2693 = vmatpush.bf16.msra.mxu0 %v2596
          %2694 = vmatpush.bf16.msra.mxu0 %v2595
          %2695 = vmatpush.bf16.msra.mxu0 %v2594
          %2696 = vmatpush.bf16.msra.mxu0 %v2593
          %2697 = vmatmul.bf16.gmra.mxu0 %v2295
          %v2698 = vpop.f32.mrf.mxu0
          %v2699 = vadd.f32 %v2399, %v2698
          %v2700 = vpop.f32.mrf.mxu0
          %v2701 = vadd.f32 %v2399, %v2700
          %2702 = vdwg.mxu0
          %2703 = vmatpush.bf16.msra.mxu0 %v2608
          %2704 = vmatpush.bf16.msra.mxu0 %v2607
          %2705 = vmatpush.bf16.msra.mxu0 %v2606
          %2706 = vmatpush.bf16.msra.mxu0 %v2605
          %2707 = vmatpush.bf16.msra.mxu0 %v2604
          %2708 = vmatpush.bf16.msra.mxu0 %v2603
          %2709 = vmatpush.bf16.msra.mxu0 %v2602
          %2710 = vmatpush.bf16.msra.mxu0 %v2601
          %2711 = vmatmul.bf16.gmra.mxu0 %v2296
          %v2712 = vpop.f32.mrf.mxu0
          %v2713 = vadd.f32 %v2699, %v2712
          %v2714 = vpop.f32.mrf.mxu0
          %v2715 = vadd.f32 %v2701, %v2714
          %2716 = vdwg.mxu0
          %2717 = vmatpush.bf16.msra.mxu0 %v2616
          %2718 = vmatpush.bf16.msra.mxu0 %v2615
          %2719 = vmatpush.bf16.msra.mxu0 %v2614
          %2720 = vmatpush.bf16.msra.mxu0 %v2613
          %2721 = vmatpush.bf16.msra.mxu0 %v2612
          %2722 = vmatpush.bf16.msra.mxu0 %v2611
          %2723 = vmatpush.bf16.msra.mxu0 %v2610
          %2724 = vmatpush.bf16.msra.mxu0 %v2609
          %2725 = vmatmul.bf16.gmra.mxu0 %v2297
          %v2726 = vpop.f32.mrf.mxu0
          %v2727 = vadd.f32 %v2713, %v2726
          %v2728 = vpop.f32.mrf.mxu0
          %v2729 = vadd.f32 %v2715, %v2728
          %2730 = vdwg.mxu0
          %2731 = vmatpush.bf16.msra.mxu0 %v2624
          %2732 = vmatpush.bf16.msra.mxu0 %v2623
          %2733 = vmatpush.bf16.msra.mxu0 %v2622
          %2734 = vmatpush.bf16.msra.mxu0 %v2621
          %2735 = vmatpush.bf16.msra.mxu0 %v2620
          %2736 = vmatpush.bf16.msra.mxu0 %v2619
          %2737 = vmatpush.bf16.msra.mxu0 %v2618
          %2738 = vmatpush.bf16.msra.mxu0 %v2617
          %2739 = vmatmul.bf16.gmra.mxu0 %v2298
          %v2740 = vpop.f32.mrf.mxu0
          %v2741 = vadd.f32 %v2727, %v2740
          %v2742 = vpop.f32.mrf.mxu0
          %v2743 = vadd.f32 %v2729, %v2742
          %2744 = vdwg.mxu0
          %2745 = vmatpush.bf16.msra.mxu0 %v2632
          %2746 = vmatpush.bf16.msra.mxu0 %v2631
          %2747 = vmatpush.bf16.msra.mxu0 %v2630
          %2748 = vmatpush.bf16.msra.mxu0 %v2629
          %2749 = vmatpush.bf16.msra.mxu0 %v2628
          %2750 = vmatpush.bf16.msra.mxu0 %v2627
          %2751 = vmatpush.bf16.msra.mxu0 %v2626
          %2752 = vmatpush.bf16.msra.mxu0 %v2625
          %2753 = vmatmul.bf16.gmra.mxu0 %v2299
          %v2754 = vpop.f32.mrf.mxu0
          %v2755 = vadd.f32 %v2741, %v2754
          %v2756 = vpop.f32.mrf.mxu0
          %v2757 = vadd.f32 %v2743, %v2756
          %2758 = vdwg.mxu0
          %2759 = vmatpush.bf16.msra.mxu0 %v2640
          %2760 = vmatpush.bf16.msra.mxu0 %v2639
          %2761 = vmatpush.bf16.msra.mxu0 %v2638
          %2762 = vmatpush.bf16.msra.mxu0 %v2637
          %2763 = vmatpush.bf16.msra.mxu0 %v2636
          %2764 = vmatpush.bf16.msra.mxu0 %v2635
          %2765 = vmatpush.bf16.msra.mxu0 %v2634
          %2766 = vmatpush.bf16.msra.mxu0 %v2633
          %2767 = vmatmul.bf16.gmra.mxu0 %v2300
          %v2768 = vpop.f32.mrf.mxu0
          %v2769 = vadd.f32 %v2755, %v2768
          %v2770 = vpop.f32.mrf.mxu0
          %v2771 = vadd.f32 %v2757, %v2770
          %2772 = vdwg.mxu0
          %v2773 = vmax.f32 %v2769, 0.0
          %v2774 = vmax.f32 %v2771, 0.0
          %v2775 = vpack.c.bf16 %v2774, %v2773
          %v2776 = vld [vmem:[%s8] sm:$0xf]
          %v2777 = vld [vmem:[%s8 + $0x4] sm:$0xf]
          %v2778 = vld [vmem:[%s8 + $0x8] sm:$0xf]
          %v2779 = vld [vmem:[%s8 + $0xc] sm:$0xf]
          %v2780 = vld [vmem:[%s8 + $0x10] sm:$0xf]
          %v2781 = vld [vmem:[%s8 + $0x14] sm:$0xf]
          %v2782 = vld [vmem:[%s8 + $0x18] sm:$0xf]
          %v2783 = vld [vmem:[%s8 + $0x1c] sm:$0xf]
          %v2784 = vld [vmem:[%s8 + $0x20] sm:$0xf]
          %v2785 = vld [vmem:[%s8 + $0x24] sm:$0xf]
          %v2786 = vld [vmem:[%s8 + $0x28] sm:$0xf]
          %v2787 = vld [vmem:[%s8 + $0x2c] sm:$0xf]
          %v2788 = vld [vmem:[%s8 + $0x30] sm:$0xf]
          %v2789 = vld [vmem:[%s8 + $0x34] sm:$0xf]
          %v2790 = vld [vmem:[%s8 + $0x38] sm:$0xf]
          %v2791 = vld [vmem:[%s8 + $0x3c] sm:$0xf]
          %v2792 = vld [vmem:[%s9] sm:$0x1]
          %v2794 = vperm.slane %v2792, 0
          %v2812 = vunpack.c.l.b16 %v2776
          %v2813 = vunpack.c.l.b16 %v2777
          %v2814 = vunpack.c.l.b16 %v2778
          %v2815 = vunpack.c.l.b16 %v2779
          %v2816 = vunpack.c.l.b16 %v2780
          %v2817 = vunpack.c.l.b16 %v2781
          %v2818 = vunpack.c.l.b16 %v2782
          %v2819 = vunpack.c.l.b16 %v2783
          %v2820 = vunpack.c.l.b16 %v2784
          %v2821 = vunpack.c.l.b16 %v2785
          %v2822 = vunpack.c.l.b16 %v2786
          %v2823 = vunpack.c.l.b16 %v2787
          %v2824 = vunpack.c.l.b16 %v2788
          %v2825 = vunpack.c.l.b16 %v2789
          %v2826 = vunpack.c.l.b16 %v2790
          %v2827 = vunpack.c.l.b16 %v2791
          %v2828 = vpack.c.b16 %v2813, %v2812
          %v2829 = vpack.c.b16 %v2815, %v2814
          %v2830 = vpack.c.b16 %v2817, %v2816
          %v2831 = vpack.c.b16 %v2819, %v2818
          %v2832 = vpack.c.b16 %v2821, %v2820
          %v2833 = vpack.c.b16 %v2823, %v2822
          %v2834 = vpack.c.b16 %v2825, %v2824
          %v2835 = vpack.c.b16 %v2827, %v2826
          %2844 = vmatpush.bf16.msra.mxu0 %v2835
          %2845 = vmatpush.bf16.msra.mxu0 %v2834
          %2846 = vmatpush.bf16.msra.mxu0 %v2833
          %2847 = vmatpush.bf16.msra.mxu0 %v2832
          %2848 = vmatpush.bf16.msra.mxu0 %v2831
          %2849 = vmatpush.bf16.msra.mxu0 %v2830
          %2850 = vmatpush.bf16.msra.mxu0 %v2829
          %2851 = vmatpush.bf16.msra.mxu0 %v2828
          %2852 = vmatmul.bf16.gmra.mxu0 %v2775
          %v2853 = vpop.f32.mrf.mxu0
          %v2854 = vadd.f32 %v2794, %v2853
          %v2855 = vpop.f32.mrf.mxu0
          %v2856 = vadd.f32 %v2794, %v2855
          %2857 = vdwg.mxu0
          %v2858 = vmax.f32 %v2854, 0.0
          %v2859 = vmax.f32 %v2856, 0.0
          %v2860 = vpack.c.bf16 %v2859, %v2858
          %v2861 = vld [vmem:[%s10] sm:$0xf]
          %v2862 = vld [vmem:[%s10 + $0x4] sm:$0xf]
          %v2863 = vld [vmem:[%s10 + $0x8] sm:$0xf]
          %v2864 = vld [vmem:[%s10 + $0xc] sm:$0xf]
          %v2865 = vld [vmem:[%s10 + $0x10] sm:$0xf]
          %v2866 = vld [vmem:[%s10 + $0x14] sm:$0xf]
          %v2867 = vld [vmem:[%s10 + $0x18] sm:$0xf]
          %v2868 = vld [vmem:[%s10 + $0x1c] sm:$0xf]
          %v2869 = vld [vmem:[%s10 + $0x20] sm:$0xf]
          %v2870 = vld [vmem:[%s10 + $0x24] sm:$0xf]
          %v2871 = vld [vmem:[%s10 + $0x28] sm:$0xf]
          %v2872 = vld [vmem:[%s10 + $0x2c] sm:$0xf]
          %v2873 = vld [vmem:[%s10 + $0x30] sm:$0xf]
          %v2874 = vld [vmem:[%s10 + $0x34] sm:$0xf]
          %v2875 = vld [vmem:[%s10 + $0x38] sm:$0xf]
          %v2876 = vld [vmem:[%s10 + $0x3c] sm:$0xf]
          %v2877 = vld [vmem:[%s11] sm:$0x1]
          %v2879 = vperm.slane %v2877, 0
          %v2897 = vunpack.c.l.b16 %v2861
          %v2898 = vunpack.c.l.b16 %v2862
          %v2899 = vunpack.c.l.b16 %v2863
          %v2900 = vunpack.c.l.b16 %v2864
          %v2901 = vunpack.c.l.b16 %v2865
          %v2902 = vunpack.c.l.b16 %v2866
          %v2903 = vunpack.c.l.b16 %v2867
          %v2904 = vunpack.c.l.b16 %v2868
          %v2905 = vunpack.c.l.b16 %v2869
          %v2906 = vunpack.c.l.b16 %v2870
          %v2907 = vunpack.c.l.b16 %v2871
          %v2908 = vunpack.c.l.b16 %v2872
          %v2909 = vunpack.c.l.b16 %v2873
          %v2910 = vunpack.c.l.b16 %v2874
          %v2911 = vunpack.c.l.b16 %v2875
          %v2912 = vunpack.c.l.b16 %v2876
          %v2913 = vpack.c.b16 %v2898, %v2897
          %v2914 = vpack.c.b16 %v2900, %v2899
          %v2915 = vpack.c.b16 %v2902, %v2901
          %v2916 = vpack.c.b16 %v2904, %v2903
          %v2917 = vpack.c.b16 %v2906, %v2905
          %v2918 = vpack.c.b16 %v2908, %v2907
          %v2919 = vpack.c.b16 %v2910, %v2909
          %v2920 = vpack.c.b16 %v2912, %v2911
          %2929 = vmatpush.bf16.msra.mxu0 %v2920
          %2930 = vmatpush.bf16.msra.mxu0 %v2919
          %2931 = vmatpush.bf16.msra.mxu0 %v2918
          %2932 = vmatpush.bf16.msra.mxu0 %v2917
          %2933 = vmatpush.bf16.msra.mxu0 %v2916
          %2934 = vmatpush.bf16.msra.mxu0 %v2915
          %2935 = vmatpush.bf16.msra.mxu0 %v2914
          %2936 = vmatpush.bf16.msra.mxu0 %v2913
          %2937 = vmatmul.bf16.gmra.mxu0 %v2860
          %v2938 = vpop.f32.mrf.mxu0
          %v2939 = vadd.f32 %v2879, %v2938
          %v2940 = vpop.f32.mrf.mxu0
          %v2941 = vadd.f32 %v2879, %v2940
          %2942 = vdwg.mxu0
          %v2943 = vpack.c.bf16 %v2939, %v2939
          %v2944 = vpack.c.bf16 %v2941, %v2941
          %2945 = vst [vmem:[%s508] sm:$0xf] %v2943
          %2946 = vst [vmem:[%s508 + $0x4] sm:$0xf] %v2944
        $region99: #{custom_bert_forward.1} parent=86 // pred_fallthru
          _
        %s2947 = smul.u32 2, %s27
        %p2948 = scmp.lt.s32.totalorder %s2947, 1
        %s2949 = scalar_select %p2948, %s2947, 1
        %s2950 = smul.addr %s2949, 4
        %s2951 = scalar_lea.vmem %s12, %s2950
        // Predicated region
        $region100: #{custom_bert_forward.1} parent=86 // pred_check
          %p2952 = pneg %p322
        $region101: #{custom_bert_forward.1} parent=86 // pred_check_branch
          %2954 = sbr.rel (%p2952) target = $region103
        $region102: #{custom_bert_forward.1} parent=86 // pred_region
          %s2955 = smul.u32 2, %s27
        $region103: #{custom_bert_forward.1} parent=86 // pred_fallthru
          _
        // Predicated region
        $region104: #{custom_bert_forward.1} parent=86 // pred_check
          %p2956 = pneg %p322
        $region105: #{custom_bert_forward.1} parent=86 // pred_check_branch
          %2958 = sbr.rel (%p2956) target = $region107
        $region106: #{custom_bert_forward.1} parent=86 // pred_region
          %s2959 = smul.u32 2, %s27
          %p2960 = scmp.lt.s32.totalorder %s2959, 1
          %s2961 = scalar_select %p2960, %s2959, 1
          %s2962 = smul.addr %s2961, 4
          %s2963 = scalar_lea.vmem %s12, %s2962
        $region107: #{custom_bert_forward.1} parent=86 // pred_fallthru
          _
      $region87: #{custom_bert_forward.1} parent=5 // pred_fallthru
        _
      %p2964 = scmp.le.s32.totalorder 2, %s18
      // Predicated region
      $region108: #{custom_bert_forward.1} parent=5 // pred_check
        %p2965 = pneg %p2964
      $region109: #{custom_bert_forward.1} parent=5 // pred_check_branch
        %2967 = sbr.rel (%p2965) target = $region111
      $region110: #{custom_bert_forward.1} parent=5 // pred_region
        %s2968 = ssub.s32 %s18, 2
      $region111: #{custom_bert_forward.1} parent=5 // pred_fallthru
        _
    $region6: #{custom_bert_forward.1} parent=1 // loop_footer
      %s22 = sadd.s32 1, %s18
    $region7: #{custom_bert_forward.1} parent=1 // loop_footer_branch
      %17 = sbr.rel target = $region3
    $region8: #{custom_bert_forward.1} parent=1 // loop_exit
      _

</llo_original>
